<compile_context>
chip_gen: v7x
topology: tpu7x:2x2x1
jax: 0.10.0
libtpu: 0.0.40
codegen_flags: <defaults>
</compile_context>

<pallas_src>
import jax
import jax.numpy as jnp
import numpy as np
from jax.experimental import pallas as pl
from jax.experimental.pallas import tpu as pltpu

DP = 128       # padded input-feature width (lane-aligned) for the in-kernel projection
OUT_LANES = 128  # lane-dense output slab width


def rnn_classifier_kernel(x_ref, wih0_ref, b0_ref, whh0_ref, wih1_ref, whh1_ref,
                          b1_ref, fcw_ref, fcb_ref, out_ref):
    """Two-layer LSTM recurrence + final FC, fully unrolled over time.

    x_ref   : (T*B, DP)  f32   time-major inputs, feature dim zero-padded to 128
    wih0_ref: (DP, 4H)   f32   layer-0 input weights (rows zero-padded)
    b0_ref  : (1, 4H)    f32   b_ih0 + b_hh0
    whh0_ref: (H, 4H)    bf16  layer-0 recurrent weights
    wih1_ref: (H, 4H)    bf16  layer-1 input weights
    whh1_ref: (H, 4H)    bf16  layer-1 recurrent weights
    b1_ref  : (1, 4H)    f32   b_ih1 + b_hh1
    fcw_ref : (1, H)     f32   final FC weights
    fcb_ref : (1, 1)     f32   final FC bias
    out_ref : (B, 128)   f32   sigmoid(logit) broadcast across lanes
    """
    TB = x_ref.shape[0]
    B = out_ref.shape[0]
    T = TB // B
    H = whh0_ref.shape[0]

    # ---- layer-0 input projection: time-independent, hoisted before the recurrence.
    # One (T*B, DP) @ (DP, 4H) f32 matmul; off the serial path.
    px = jnp.dot(x_ref[...], wih0_ref[...],
                 preferred_element_type=jnp.float32) + b0_ref[...]

    # Recurrent weights loaded once; small enough (bf16, unpadded) to stay resident.
    whh0 = whh0_ref[...]
    wih1 = wih1_ref[...]
    whh1 = whh1_ref[...]
    b1 = b1_ref[...]
    fcw = fcw_ref[...]

    def sig(v):
        # Single-EUP-op sigmoid (tanh form); mathematically identical to logistic.
        return 0.5 * (jnp.tanh(0.5 * v) + 1.0)

    def cell(pre, c):
        # PyTorch gate order (i, f, g, o) over 4H = 256 lanes; static lane slices.
        i = sig(pre[:, 0 * H:1 * H])
        f = sig(pre[:, 1 * H:2 * H])
        g = jnp.tanh(pre[:, 2 * H:3 * H])
        o = sig(pre[:, 3 * H:4 * H])
        c_new = f * c + i * g
        h_new = o * jnp.tanh(c_new)
        return h_new, c_new

    h1 = jnp.zeros((B, H), jnp.float32)
    c1 = jnp.zeros((B, H), jnp.float32)
    h2 = jnp.zeros((B, H), jnp.float32)
    c2 = jnp.zeros((B, H), jnp.float32)

    # T is small and static -> full unroll. Per step: 3 small bf16 MXU pushes
    # (K=64, N=256) + EUP/VPU gate math; elementwise stays f32.
    for t in range(T):
        pre0 = px[t * B:(t + 1) * B, :] + jnp.dot(
            h1.astype(jnp.bfloat16), whh0, preferred_element_type=jnp.float32)
        h1, c1 = cell(pre0, c1)

        # layer 1: two dots accumulate into one f32 pre-activation (no concat copies).
        pre1 = (jnp.dot(h1.astype(jnp.bfloat16), wih1,
                        preferred_element_type=jnp.float32)
                + jnp.dot(h2.astype(jnp.bfloat16), whh1,
                          preferred_element_type=jnp.float32)
                + b1)
        h2, c2 = cell(pre1, c2)

    # Final FC as VPU multiply + lane reduce (avoids an N=1 MXU matmul);
    # lane-dense output slab, sliced to (B,) in the wrapper.
    logit = jnp.sum(h2 * fcw, axis=-1, keepdims=True) + fcb_ref[...]
    out_ref[...] = jnp.broadcast_to(sig(logit), (B, OUT_LANES))


def rnn_classifier_forward(x, params):
    """x: (B, T, D) float32. Returns (B,) float32 (sigmoid probabilities)."""
    B, T, D = x.shape
    H = params["whh0"].shape[1]

    # ---- layout prep (cheap, once per call) --------------------------------------
    # Time-major rows so each timestep is a contiguous sublane block: row t*B + b.
    x_tm = jnp.transpose(x, (1, 0, 2)).reshape(T * B, D)
    x_p = jnp.pad(x_tm, ((0, 0), (0, DP - D)))                     # (T*B, DP) f32

    wih0_p = jnp.pad(params["wih0"].T, ((0, DP - D), (0, 0)))      # (DP, 4H) f32
    b0 = (params["bih0"] + params["bhh0"]).reshape(1, 4 * H)       # (1, 4H)  f32

    # Recurrent matmul operands in bf16 (MXU-native on v6e/v7x); accumulation is f32.
    whh0_b = params["whh0"].T.astype(jnp.bfloat16)                 # (H, 4H)
    wih1_b = params["wih1"].T.astype(jnp.bfloat16)                 # (H, 4H)
    whh1_b = params["whh1"].T.astype(jnp.bfloat16)                 # (H, 4H)
    b1 = (params["bih1"] + params["bhh1"]).reshape(1, 4 * H)       # (1, 4H)  f32

    fcw = params["fcw"]                                            # (1, H)   f32
    fcb = params["fcb"].reshape(1, 1)                              # (1, 1)   f32

    def full(shape):
        return pl.BlockSpec(shape, lambda i, _s=len(shape): (0,) * _s)

    # TODO(synk): with many independent sequences, add a leading "parallel" grid axis
    # over batch chunks so v7x's second TensorCore is used; B=2 cannot occupy it.
    out = pl.pallas_call(
        rnn_classifier_kernel,
        out_shape=jax.ShapeDtypeStruct((B, OUT_LANES), jnp.float32),
        grid_spec=pltpu.PrefetchScalarGridSpec(
            num_scalar_prefetch=0,
            grid=(1,),                                   # whole recurrence in one step
            in_specs=[
                full((T * B, DP)),      # x_p
                full((DP, 4 * H)),      # wih0_p
                full((1, 4 * H)),       # b0
                full((H, 4 * H)),       # whh0_b
                full((H, 4 * H)),       # wih1_b
                full((H, 4 * H)),       # whh1_b
                full((1, 4 * H)),       # b1
                full((1, H)),           # fcw
                full((1, 1)),           # fcb
            ],
            out_specs=pl.BlockSpec((B, OUT_LANES), lambda i: (0, 0)),
        ),
        compiler_params=pltpu.CompilerParams(
            dimension_semantics=("arbitrary",)),
    )(x_p, wih0_p, b0, whh0_b, wih1_b, whh1_b, b1, fcw, fcb)

    return out[:, 0]


def init_params(key, input_size, hidden_size):
    """Deterministic init mimicking PyTorch LSTM/Linear uniform(-1/sqrt(H), 1/sqrt(H))."""
    H = hidden_size
    bound = 1.0 / np.sqrt(H)
    ks = jax.random.split(key, 10)
    u = lambda k, shape: jax.random.uniform(k, shape, jnp.float32, -bound, bound)
    return {
        "wih0": u(ks[0], (4 * H, input_size)),
        "whh0": u(ks[1], (4 * H, H)),
        "bih0": u(ks[2], (4 * H,)),
        "bhh0": u(ks[3], (4 * H,)),
        "wih1": u(ks[4], (4 * H, H)),
        "whh1": u(ks[5], (4 * H, H)),
        "bih1": u(ks[6], (4 * H,)),
        "bhh1": u(ks[7], (4 * H,)),
        "fcw":  u(ks[8], (1, H)),
        "fcb":  u(ks[9], (1,)),
    }


def _lstm_cell_ref(x, h, c, wih_t, whh_t, b):
    """PyTorch LSTM cell semantics, gate order (i, f, g, o) — f32 reference."""
    H = h.shape[-1]
    pre = x @ wih_t + h @ whh_t + b
    i = jax.nn.sigmoid(pre[:, 0 * H:1 * H])
    f = jax.nn.sigmoid(pre[:, 1 * H:2 * H])
    g = jnp.tanh(pre[:, 2 * H:3 * H])
    o = jax.nn.sigmoid(pre[:, 3 * H:4 * H])
    c_new = f * c + i * g
    h_new = o * jnp.tanh(c_new)
    return h_new, c_new


def reference_forward(x, params):
    """Pure-JAX f32 reference of the PyTorch module forward (for validation)."""
    B, T, D = x.shape
    H = params["whh0"].shape[1]
    h1 = jnp.zeros((B, H), jnp.float32)
    c1 = jnp.zeros((B, H), jnp.float32)
    h2 = jnp.zeros((B, H), jnp.float32)
    c2 = jnp.zeros((B, H), jnp.float32)
    b0 = (params["bih0"] + params["bhh0"]).reshape(1, 4 * H)
    b1 = (params["bih1"] + params["bhh1"]).reshape(1, 4 * H)
    for t in range(T):
        h1, c1 = _lstm_cell_ref(x[:, t, :], h1, c1, params["wih0"].T, params["whh0"].T, b0)
        h2, c2 = _lstm_cell_ref(h1, h2, c2, params["wih1"].T, params["whh1"].T, b1)
    logit = h2 @ params["fcw"].T + params["fcb"].reshape(1, 1)
    return jax.nn.sigmoid(logit)[:, 0]


if __name__ == "__main__":
    B, T, D, H = 2, 8, 24, 64
    key = jax.random.PRNGKey(0)
    k_x, k_p = jax.random.split(key)
    x = jax.random.normal(k_x, (B, T, D), jnp.float32)
    params = init_params(k_p, D, H)

    y = rnn_classifier_forward(x, params)
    y = jax.block_until_ready(y)

    y_ref = reference_forward(x, params)
    # Recurrent matmuls use bf16 MXU operands (f32 accumulation) -> relaxed tolerance.
    np.testing.assert_allclose(np.asarray(y), np.asarray(y_ref), atol=2e-2, rtol=2e-2)
    assert y.shape == (B,)
    print("KERNEL_OK")
</pallas_src>

<mosaic_0001>
module attributes {stable_mosaic.version = 11 : i64} {
  func.func @rnn_classifier_kernel(%arg0: i32, %arg1: memref<16x128xf32, #tpu.memory_space<vmem>>, %arg2: memref<128x256xf32, #tpu.memory_space<vmem>>, %arg3: memref<1x256xf32, #tpu.memory_space<vmem>>, %arg4: memref<64x256xbf16, #tpu.memory_space<vmem>>, %arg5: memref<64x256xbf16, #tpu.memory_space<vmem>>, %arg6: memref<64x256xbf16, #tpu.memory_space<vmem>>, %arg7: memref<1x256xf32, #tpu.memory_space<vmem>>, %arg8: memref<1x64xf32, #tpu.memory_space<vmem>>, %arg9: memref<1x1xf32, #tpu.memory_space<vmem>>, %arg10: memref<2x128xf32, #tpu.memory_space<vmem>>) attributes {dimension_semantics = [#tpu.dimension_semantics<arbitrary>], iteration_bounds = array<i64: 1>, scalar_prefetch = 0 : i64, scratch_operands = 0 : i64, tpu.core_type = #tpu.core_type<tc>, window_params = [{pipeline_mode = #tpu.pipeline_mode<synchronous>, transform_indices = @transform_0, window_bounds = array<i64: 16, 128>}, {pipeline_mode = #tpu.pipeline_mode<synchronous>, transform_indices = @transform_1, window_bounds = array<i64: 128, 256>}, {pipeline_mode = #tpu.pipeline_mode<synchronous>, transform_indices = @transform_2, window_bounds = array<i64: 1, 256>}, {pipeline_mode = #tpu.pipeline_mode<synchronous>, transform_indices = @transform_3, window_bounds = array<i64: 64, 256>}, {pipeline_mode = #tpu.pipeline_mode<synchronous>, transform_indices = @transform_4, window_bounds = array<i64: 64, 256>}, {pipeline_mode = #tpu.pipeline_mode<synchronous>, transform_indices = @transform_5, window_bounds = array<i64: 64, 256>}, {pipeline_mode = #tpu.pipeline_mode<synchronous>, transform_indices = @transform_6, window_bounds = array<i64: 1, 256>}, {pipeline_mode = #tpu.pipeline_mode<synchronous>, transform_indices = @transform_7, window_bounds = array<i64: 1, 64>}, {pipeline_mode = #tpu.pipeline_mode<synchronous>, transform_indices = @transform_8, window_bounds = array<i64: 1, 1>}, {pipeline_mode = #tpu.pipeline_mode<synchronous>, transform_indices = @transform_9, window_bounds = array<i64: 2, 128>}]} {
    %c0 = arith.constant 0 : index
    %c0_0 = arith.constant 0 : index
    %0 = vector.load %arg1[%c0, %c0_0] : memref<16x128xf32, #tpu.memory_space<vmem>>, vector<16x128xf32>
    %c0_1 = arith.constant 0 : index
    %c0_2 = arith.constant 0 : index
    %1 = vector.load %arg2[%c0_1, %c0_2] : memref<128x256xf32, #tpu.memory_space<vmem>>, vector<128x256xf32>
    %cst = arith.constant dense<0.000000e+00> : vector<16x256xf32>
    %2 = tpu.matmul %0, %1, %cst {dimension_numbers = #tpu.dot_dimension_numbers<[1], [0], [0], [1], [0, 0, 1, 1], [], []>} : vector<16x128xf32>, vector<128x256xf32>, vector<16x256xf32> -> vector<16x256xf32>
    %c0_3 = arith.constant 0 : index
    %c0_4 = arith.constant 0 : index
    %3 = vector.load %arg3[%c0_3, %c0_4] : memref<1x256xf32, #tpu.memory_space<vmem>>, vector<1x256xf32>
    %4 = vector.broadcast %3 : vector<1x256xf32> to vector<16x256xf32>
    %5 = arith.addf %2, %4 : vector<16x256xf32>
    %c0_5 = arith.constant 0 : index
    %c0_6 = arith.constant 0 : index
    %6 = vector.load %arg4[%c0_5, %c0_6] : memref<64x256xbf16, #tpu.memory_space<vmem>>, vector<64x256xbf16>
    %c0_7 = arith.constant 0 : index
    %c0_8 = arith.constant 0 : index
    %7 = vector.load %arg5[%c0_7, %c0_8] : memref<64x256xbf16, #tpu.memory_space<vmem>>, vector<64x256xbf16>
    %c0_9 = arith.constant 0 : index
    %c0_10 = arith.constant 0 : index
    %8 = vector.load %arg6[%c0_9, %c0_10] : memref<64x256xbf16, #tpu.memory_space<vmem>>, vector<64x256xbf16>
    %c0_11 = arith.constant 0 : index
    %c0_12 = arith.constant 0 : index
    %9 = vector.load %arg7[%c0_11, %c0_12] : memref<1x256xf32, #tpu.memory_space<vmem>>, vector<1x256xf32>
    %c0_13 = arith.constant 0 : index
    %c0_14 = arith.constant 0 : index
    %10 = vector.load %arg8[%c0_13, %c0_14] : memref<1x64xf32, #tpu.memory_space<vmem>>, vector<1x64xf32>
    %cst_15 = arith.constant 0.000000e+00 : f32
    %11 = vector.broadcast %cst_15 : f32 to vector<2x64xf32>
    %cst_16 = arith.constant 0.000000e+00 : f32
    %12 = vector.broadcast %cst_16 : f32 to vector<2x64xf32>
    %cst_17 = arith.constant 0.000000e+00 : f32
    %13 = vector.broadcast %cst_17 : f32 to vector<2x64xf32>
    %cst_18 = arith.constant 0.000000e+00 : f32
    %14 = vector.broadcast %cst_18 : f32 to vector<2x64xf32>
    %15 = vector.extract_strided_slice %5 {offsets = [0, 0], sizes = [2, 256], strides = [1, 1]} : vector<16x256xf32> to vector<2x256xf32>
    %16 = arith.truncf %11 : vector<2x64xf32> to vector<2x64xbf16>
    %cst_19 = arith.constant dense<0.000000e+00> : vector<2x256xf32>
    %17 = tpu.matmul %16, %6, %cst_19 {dimension_numbers = #tpu.dot_dimension_numbers<[1], [0], [0], [1], [0, 0, 1, 1], [], []>} : vector<2x64xbf16>, vector<64x256xbf16>, vector<2x256xf32> -> vector<2x256xf32>
    %18 = arith.addf %15, %17 : vector<2x256xf32>
    %19 = vector.extract_strided_slice %18 {offsets = [0, 0], sizes = [2, 64], strides = [1, 1]} : vector<2x256xf32> to vector<2x64xf32>
    %cst_20 = arith.constant 5.000000e-01 : f32
    %20 = vector.broadcast %cst_20 : f32 to vector<2x64xf32>
    %21 = arith.mulf %20, %19 : vector<2x64xf32>
    %22 = math.tanh %21 : vector<2x64xf32>
    %cst_21 = arith.constant 1.000000e+00 : f32
    %23 = vector.broadcast %cst_21 : f32 to vector<2x64xf32>
    %24 = arith.addf %22, %23 : vector<2x64xf32>
    %cst_22 = arith.constant 5.000000e-01 : f32
    %25 = vector.broadcast %cst_22 : f32 to vector<2x64xf32>
    %26 = arith.mulf %25, %24 : vector<2x64xf32>
    %27 = vector.extract_strided_slice %18 {offsets = [0, 64], sizes = [2, 64], strides = [1, 1]} : vector<2x256xf32> to vector<2x64xf32>
    %cst_23 = arith.constant 5.000000e-01 : f32
    %28 = vector.broadcast %cst_23 : f32 to vector<2x64xf32>
    %29 = arith.mulf %28, %27 : vector<2x64xf32>
    %30 = math.tanh %29 : vector<2x64xf32>
    %cst_24 = arith.constant 1.000000e+00 : f32
    %31 = vector.broadcast %cst_24 : f32 to vector<2x64xf32>
    %32 = arith.addf %30, %31 : vector<2x64xf32>
    %cst_25 = arith.constant 5.000000e-01 : f32
    %33 = vector.broadcast %cst_25 : f32 to vector<2x64xf32>
    %34 = arith.mulf %33, %32 : vector<2x64xf32>
    %35 = vector.extract_strided_slice %18 {offsets = [0, 128], sizes = [2, 64], strides = [1, 1]} : vector<2x256xf32> to vector<2x64xf32>
    %36 = math.tanh %35 : vector<2x64xf32>
    %37 = vector.extract_strided_slice %18 {offsets = [0, 192], sizes = [2, 64], strides = [1, 1]} : vector<2x256xf32> to vector<2x64xf32>
    %cst_26 = arith.constant 5.000000e-01 : f32
    %38 = vector.broadcast %cst_26 : f32 to vector<2x64xf32>
    %39 = arith.mulf %38, %37 : vector<2x64xf32>
    %40 = math.tanh %39 : vector<2x64xf32>
    %cst_27 = arith.constant 1.000000e+00 : f32
    %41 = vector.broadcast %cst_27 : f32 to vector<2x64xf32>
    %42 = arith.addf %40, %41 : vector<2x64xf32>
    %cst_28 = arith.constant 5.000000e-01 : f32
    %43 = vector.broadcast %cst_28 : f32 to vector<2x64xf32>
    %44 = arith.mulf %43, %42 : vector<2x64xf32>
    %45 = arith.mulf %34, %12 : vector<2x64xf32>
    %46 = arith.mulf %26, %36 : vector<2x64xf32>
    %47 = arith.addf %45, %46 : vector<2x64xf32>
    %48 = math.tanh %47 : vector<2x64xf32>
    %49 = arith.mulf %44, %48 : vector<2x64xf32>
    %50 = arith.truncf %49 : vector<2x64xf32> to vector<2x64xbf16>
    %cst_29 = arith.constant dense<0.000000e+00> : vector<2x256xf32>
    %51 = tpu.matmul %50, %7, %cst_29 {dimension_numbers = #tpu.dot_dimension_numbers<[1], [0], [0], [1], [0, 0, 1, 1], [], []>} : vector<2x64xbf16>, vector<64x256xbf16>, vector<2x256xf32> -> vector<2x256xf32>
    %52 = arith.truncf %13 : vector<2x64xf32> to vector<2x64xbf16>
    %cst_30 = arith.constant dense<0.000000e+00> : vector<2x256xf32>
    %53 = tpu.matmul %52, %8, %cst_30 {dimension_numbers = #tpu.dot_dimension_numbers<[1], [0], [0], [1], [0, 0, 1, 1], [], []>} : vector<2x64xbf16>, vector<64x256xbf16>, vector<2x256xf32> -> vector<2x256xf32>
    %54 = arith.addf %51, %53 : vector<2x256xf32>
    %55 = vector.broadcast %9 : vector<1x256xf32> to vector<2x256xf32>
    %56 = arith.addf %54, %55 : vector<2x256xf32>
    %57 = vector.extract_strided_slice %56 {offsets = [0, 0], sizes = [2, 64], strides = [1, 1]} : vector<2x256xf32> to vector<2x64xf32>
    %cst_31 = arith.constant 5.000000e-01 : f32
    %58 = vector.broadcast %cst_31 : f32 to vector<2x64xf32>
    %59 = arith.mulf %58, %57 : vector<2x64xf32>
    %60 = math.tanh %59 : vector<2x64xf32>
    %cst_32 = arith.constant 1.000000e+00 : f32
    %61 = vector.broadcast %cst_32 : f32 to vector<2x64xf32>
    %62 = arith.addf %60, %61 : vector<2x64xf32>
    %cst_33 = arith.constant 5.000000e-01 : f32
    %63 = vector.broadcast %cst_33 : f32 to vector<2x64xf32>
    %64 = arith.mulf %63, %62 : vector<2x64xf32>
    %65 = vector.extract_strided_slice %56 {offsets = [0, 64], sizes = [2, 64], strides = [1, 1]} : vector<2x256xf32> to vector<2x64xf32>
    %cst_34 = arith.constant 5.000000e-01 : f32
    %66 = vector.broadcast %cst_34 : f32 to vector<2x64xf32>
    %67 = arith.mulf %66, %65 : vector<2x64xf32>
    %68 = math.tanh %67 : vector<2x64xf32>
    %cst_35 = arith.constant 1.000000e+00 : f32
    %69 = vector.broadcast %cst_35 : f32 to vector<2x64xf32>
    %70 = arith.addf %68, %69 : vector<2x64xf32>
    %cst_36 = arith.constant 5.000000e-01 : f32
    %71 = vector.broadcast %cst_36 : f32 to vector<2x64xf32>
    %72 = arith.mulf %71, %70 : vector<2x64xf32>
    %73 = vector.extract_strided_slice %56 {offsets = [0, 128], sizes = [2, 64], strides = [1, 1]} : vector<2x256xf32> to vector<2x64xf32>
    %74 = math.tanh %73 : vector<2x64xf32>
    %75 = vector.extract_strided_slice %56 {offsets = [0, 192], sizes = [2, 64], strides = [1, 1]} : vector<2x256xf32> to vector<2x64xf32>
    %cst_37 = arith.constant 5.000000e-01 : f32
    %76 = vector.broadcast %cst_37 : f32 to vector<2x64xf32>
    %77 = arith.mulf %76, %75 : vector<2x64xf32>
    %78 = math.tanh %77 : vector<2x64xf32>
    %cst_38 = arith.constant 1.000000e+00 : f32
    %79 = vector.broadcast %cst_38 : f32 to vector<2x64xf32>
    %80 = arith.addf %78, %79 : vector<2x64xf32>
    %cst_39 = arith.constant 5.000000e-01 : f32
    %81 = vector.broadcast %cst_39 : f32 to vector<2x64xf32>
    %82 = arith.mulf %81, %80 : vector<2x64xf32>
    %83 = arith.mulf %72, %14 : vector<2x64xf32>
    %84 = arith.mulf %64, %74 : vector<2x64xf32>
    %85 = arith.addf %83, %84 : vector<2x64xf32>
    %86 = math.tanh %85 : vector<2x64xf32>
    %87 = arith.mulf %82, %86 : vector<2x64xf32>
    %88 = vector.extract_strided_slice %5 {offsets = [2, 0], sizes = [2, 256], strides = [1, 1]} : vector<16x256xf32> to vector<2x256xf32>
    %89 = arith.truncf %49 : vector<2x64xf32> to vector<2x64xbf16>
    %cst_40 = arith.constant dense<0.000000e+00> : vector<2x256xf32>
    %90 = tpu.matmul %89, %6, %cst_40 {dimension_numbers = #tpu.dot_dimension_numbers<[1], [0], [0], [1], [0, 0, 1, 1], [], []>} : vector<2x64xbf16>, vector<64x256xbf16>, vector<2x256xf32> -> vector<2x256xf32>
    %91 = arith.addf %88, %90 : vector<2x256xf32>
    %92 = vector.extract_strided_slice %91 {offsets = [0, 0], sizes = [2, 64], strides = [1, 1]} : vector<2x256xf32> to vector<2x64xf32>
    %cst_41 = arith.constant 5.000000e-01 : f32
    %93 = vector.broadcast %cst_41 : f32 to vector<2x64xf32>
    %94 = arith.mulf %93, %92 : vector<2x64xf32>
    %95 = math.tanh %94 : vector<2x64xf32>
    %cst_42 = arith.constant 1.000000e+00 : f32
    %96 = vector.broadcast %cst_42 : f32 to vector<2x64xf32>
    %97 = arith.addf %95, %96 : vector<2x64xf32>
    %cst_43 = arith.constant 5.000000e-01 : f32
    %98 = vector.broadcast %cst_43 : f32 to vector<2x64xf32>
    %99 = arith.mulf %98, %97 : vector<2x64xf32>
    %100 = vector.extract_strided_slice %91 {offsets = [0, 64], sizes = [2, 64], strides = [1, 1]} : vector<2x256xf32> to vector<2x64xf32>
    %cst_44 = arith.constant 5.000000e-01 : f32
    %101 = vector.broadcast %cst_44 : f32 to vector<2x64xf32>
    %102 = arith.mulf %101, %100 : vector<2x64xf32>
    %103 = math.tanh %102 : vector<2x64xf32>
    %cst_45 = arith.constant 1.000000e+00 : f32
    %104 = vector.broadcast %cst_45 : f32 to vector<2x64xf32>
    %105 = arith.addf %103, %104 : vector<2x64xf32>
    %cst_46 = arith.constant 5.000000e-01 : f32
    %106 = vector.broadcast %cst_46 : f32 to vector<2x64xf32>
    %107 = arith.mulf %106, %105 : vector<2x64xf32>
    %108 = vector.extract_strided_slice %91 {offsets = [0, 128], sizes = [2, 64], strides = [1, 1]} : vector<2x256xf32> to vector<2x64xf32>
    %109 = math.tanh %108 : vector<2x64xf32>
    %110 = vector.extract_strided_slice %91 {offsets = [0, 192], sizes = [2, 64], strides = [1, 1]} : vector<2x256xf32> to vector<2x64xf32>
    %cst_47 = arith.constant 5.000000e-01 : f32
    %111 = vector.broadcast %cst_47 : f32 to vector<2x64xf32>
    %112 = arith.mulf %111, %110 : vector<2x64xf32>
    %113 = math.tanh %112 : vector<2x64xf32>
    %cst_48 = arith.constant 1.000000e+00 : f32
    %114 = vector.broadcast %cst_48 : f32 to vector<2x64xf32>
    %115 = arith.addf %113, %114 : vector<2x64xf32>
    %cst_49 = arith.constant 5.000000e-01 : f32
    %116 = vector.broadcast %cst_49 : f32 to vector<2x64xf32>
    %117 = arith.mulf %116, %115 : vector<2x64xf32>
    %118 = arith.mulf %107, %47 : vector<2x64xf32>
    %119 = arith.mulf %99, %109 : vector<2x64xf32>
    %120 = arith.addf %118, %119 : vector<2x64xf32>
    %121 = math.tanh %120 : vector<2x64xf32>
    %122 = arith.mulf %117, %121 : vector<2x64xf32>
    %123 = arith.truncf %122 : vector<2x64xf32> to vector<2x64xbf16>
    %cst_50 = arith.constant dense<0.000000e+00> : vector<2x256xf32>
    %124 = tpu.matmul %123, %7, %cst_50 {dimension_numbers = #tpu.dot_dimension_numbers<[1], [0], [0], [1], [0, 0, 1, 1], [], []>} : vector<2x64xbf16>, vector<64x256xbf16>, vector<2x256xf32> -> vector<2x256xf32>
    %125 = arith.truncf %87 : vector<2x64xf32> to vector<2x64xbf16>
    %cst_51 = arith.constant dense<0.000000e+00> : vector<2x256xf32>
    %126 = tpu.matmul %125, %8, %cst_51 {dimension_numbers = #tpu.dot_dimension_numbers<[1], [0], [0], [1], [0, 0, 1, 1], [], []>} : vector<2x64xbf16>, vector<64x256xbf16>, vector<2x256xf32> -> vector<2x256xf32>
    %127 = arith.addf %124, %126 : vector<2x256xf32>
    %128 = vector.broadcast %9 : vector<1x256xf32> to vector<2x256xf32>
    %129 = arith.addf %127, %128 : vector<2x256xf32>
    %130 = vector.extract_strided_slice %129 {offsets = [0, 0], sizes = [2, 64], strides = [1, 1]} : vector<2x256xf32> to vector<2x64xf32>
    %cst_52 = arith.constant 5.000000e-01 : f32
    %131 = vector.broadcast %cst_52 : f32 to vector<2x64xf32>
    %132 = arith.mulf %131, %130 : vector<2x64xf32>
    %133 = math.tanh %132 : vector<2x64xf32>
    %cst_53 = arith.constant 1.000000e+00 : f32
    %134 = vector.broadcast %cst_53 : f32 to vector<2x64xf32>
    %135 = arith.addf %133, %134 : vector<2x64xf32>
    %cst_54 = arith.constant 5.000000e-01 : f32
    %136 = vector.broadcast %cst_54 : f32 to vector<2x64xf32>
    %137 = arith.mulf %136, %135 : vector<2x64xf32>
    %138 = vector.extract_strided_slice %129 {offsets = [0, 64], sizes = [2, 64], strides = [1, 1]} : vector<2x256xf32> to vector<2x64xf32>
    %cst_55 = arith.constant 5.000000e-01 : f32
    %139 = vector.broadcast %cst_55 : f32 to vector<2x64xf32>
    %140 = arith.mulf %139, %138 : vector<2x64xf32>
    %141 = math.tanh %140 : vector<2x64xf32>
    %cst_56 = arith.constant 1.000000e+00 : f32
    %142 = vector.broadcast %cst_56 : f32 to vector<2x64xf32>
    %143 = arith.addf %141, %142 : vector<2x64xf32>
    %cst_57 = arith.constant 5.000000e-01 : f32
    %144 = vector.broadcast %cst_57 : f32 to vector<2x64xf32>
    %145 = arith.mulf %144, %143 : vector<2x64xf32>
    %146 = vector.extract_strided_slice %129 {offsets = [0, 128], sizes = [2, 64], strides = [1, 1]} : vector<2x256xf32> to vector<2x64xf32>
    %147 = math.tanh %146 : vector<2x64xf32>
    %148 = vector.extract_strided_slice %129 {offsets = [0, 192], sizes = [2, 64], strides = [1, 1]} : vector<2x256xf32> to vector<2x64xf32>
    %cst_58 = arith.constant 5.000000e-01 : f32
    %149 = vector.broadcast %cst_58 : f32 to vector<2x64xf32>
    %150 = arith.mulf %149, %148 : vector<2x64xf32>
    %151 = math.tanh %150 : vector<2x64xf32>
    %cst_59 = arith.constant 1.000000e+00 : f32
    %152 = vector.broadcast %cst_59 : f32 to vector<2x64xf32>
    %153 = arith.addf %151, %152 : vector<2x64xf32>
    %cst_60 = arith.constant 5.000000e-01 : f32
    %154 = vector.broadcast %cst_60 : f32 to vector<2x64xf32>
    %155 = arith.mulf %154, %153 : vector<2x64xf32>
    %156 = arith.mulf %145, %85 : vector<2x64xf32>
    %157 = arith.mulf %137, %147 : vector<2x64xf32>
    %158 = arith.addf %156, %157 : vector<2x64xf32>
    %159 = math.tanh %158 : vector<2x64xf32>
    %160 = arith.mulf %155, %159 : vector<2x64xf32>
    %161 = vector.extract_strided_slice %5 {offsets = [4, 0], sizes = [2, 256], strides = [1, 1]} : vector<16x256xf32> to vector<2x256xf32>
    %162 = arith.truncf %122 : vector<2x64xf32> to vector<2x64xbf16>
    %cst_61 = arith.constant dense<0.000000e+00> : vector<2x256xf32>
    %163 = tpu.matmul %162, %6, %cst_61 {dimension_numbers = #tpu.dot_dimension_numbers<[1], [0], [0], [1], [0, 0, 1, 1], [], []>} : vector<2x64xbf16>, vector<64x256xbf16>, vector<2x256xf32> -> vector<2x256xf32>
    %164 = arith.addf %161, %163 : vector<2x256xf32>
    %165 = vector.extract_strided_slice %164 {offsets = [0, 0], sizes = [2, 64], strides = [1, 1]} : vector<2x256xf32> to vector<2x64xf32>
    %cst_62 = arith.constant 5.000000e-01 : f32
    %166 = vector.broadcast %cst_62 : f32 to vector<2x64xf32>
    %167 = arith.mulf %166, %165 : vector<2x64xf32>
    %168 = math.tanh %167 : vector<2x64xf32>
    %cst_63 = arith.constant 1.000000e+00 : f32
    %169 = vector.broadcast %cst_63 : f32 to vector<2x64xf32>
    %170 = arith.addf %168, %169 : vector<2x64xf32>
    %cst_64 = arith.constant 5.000000e-01 : f32
    %171 = vector.broadcast %cst_64 : f32 to vector<2x64xf32>
    %172 = arith.mulf %171, %170 : vector<2x64xf32>
    %173 = vector.extract_strided_slice %164 {offsets = [0, 64], sizes = [2, 64], strides = [1, 1]} : vector<2x256xf32> to vector<2x64xf32>
    %cst_65 = arith.constant 5.000000e-01 : f32
    %174 = vector.broadcast %cst_65 : f32 to vector<2x64xf32>
    %175 = arith.mulf %174, %173 : vector<2x64xf32>
    %176 = math.tanh %175 : vector<2x64xf32>
    %cst_66 = arith.constant 1.000000e+00 : f32
    %177 = vector.broadcast %cst_66 : f32 to vector<2x64xf32>
    %178 = arith.addf %176, %177 : vector<2x64xf32>
    %cst_67 = arith.constant 5.000000e-01 : f32
    %179 = vector.broadcast %cst_67 : f32 to vector<2x64xf32>
    %180 = arith.mulf %179, %178 : vector<2x64xf32>
    %181 = vector.extract_strided_slice %164 {offsets = [0, 128], sizes = [2, 64], strides = [1, 1]} : vector<2x256xf32> to vector<2x64xf32>
    %182 = math.tanh %181 : vector<2x64xf32>
    %183 = vector.extract_strided_slice %164 {offsets = [0, 192], sizes = [2, 64], strides = [1, 1]} : vector<2x256xf32> to vector<2x64xf32>
    %cst_68 = arith.constant 5.000000e-01 : f32
    %184 = vector.broadcast %cst_68 : f32 to vector<2x64xf32>
    %185 = arith.mulf %184, %183 : vector<2x64xf32>
    %186 = math.tanh %185 : vector<2x64xf32>
    %cst_69 = arith.constant 1.000000e+00 : f32
    %187 = vector.broadcast %cst_69 : f32 to vector<2x64xf32>
    %188 = arith.addf %186, %187 : vector<2x64xf32>
    %cst_70 = arith.constant 5.000000e-01 : f32
    %189 = vector.broadcast %cst_70 : f32 to vector<2x64xf32>
    %190 = arith.mulf %189, %188 : vector<2x64xf32>
    %191 = arith.mulf %180, %120 : vector<2x64xf32>
    %192 = arith.mulf %172, %182 : vector<2x64xf32>
    %193 = arith.addf %191, %192 : vector<2x64xf32>
    %194 = math.tanh %193 : vector<2x64xf32>
    %195 = arith.mulf %190, %194 : vector<2x64xf32>
    %196 = arith.truncf %195 : vector<2x64xf32> to vector<2x64xbf16>
    %cst_71 = arith.constant dense<0.000000e+00> : vector<2x256xf32>
    %197 = tpu.matmul %196, %7, %cst_71 {dimension_numbers = #tpu.dot_dimension_numbers<[1], [0], [0], [1], [0, 0, 1, 1], [], []>} : vector<2x64xbf16>, vector<64x256xbf16>, vector<2x256xf32> -> vector<2x256xf32>
    %198 = arith.truncf %160 : vector<2x64xf32> to vector<2x64xbf16>
    %cst_72 = arith.constant dense<0.000000e+00> : vector<2x256xf32>
    %199 = tpu.matmul %198, %8, %cst_72 {dimension_numbers = #tpu.dot_dimension_numbers<[1], [0], [0], [1], [0, 0, 1, 1], [], []>} : vector<2x64xbf16>, vector<64x256xbf16>, vector<2x256xf32> -> vector<2x256xf32>
    %200 = arith.addf %197, %199 : vector<2x256xf32>
    %201 = vector.broadcast %9 : vector<1x256xf32> to vector<2x256xf32>
    %202 = arith.addf %200, %201 : vector<2x256xf32>
    %203 = vector.extract_strided_slice %202 {offsets = [0, 0], sizes = [2, 64], strides = [1, 1]} : vector<2x256xf32> to vector<2x64xf32>
    %cst_73 = arith.constant 5.000000e-01 : f32
    %204 = vector.broadcast %cst_73 : f32 to vector<2x64xf32>
    %205 = arith.mulf %204, %203 : vector<2x64xf32>
    %206 = math.tanh %205 : vector<2x64xf32>
    %cst_74 = arith.constant 1.000000e+00 : f32
    %207 = vector.broadcast %cst_74 : f32 to vector<2x64xf32>
    %208 = arith.addf %206, %207 : vector<2x64xf32>
    %cst_75 = arith.constant 5.000000e-01 : f32
    %209 = vector.broadcast %cst_75 : f32 to vector<2x64xf32>
    %210 = arith.mulf %209, %208 : vector<2x64xf32>
    %211 = vector.extract_strided_slice %202 {offsets = [0, 64], sizes = [2, 64], strides = [1, 1]} : vector<2x256xf32> to vector<2x64xf32>
    %cst_76 = arith.constant 5.000000e-01 : f32
    %212 = vector.broadcast %cst_76 : f32 to vector<2x64xf32>
    %213 = arith.mulf %212, %211 : vector<2x64xf32>
    %214 = math.tanh %213 : vector<2x64xf32>
    %cst_77 = arith.constant 1.000000e+00 : f32
    %215 = vector.broadcast %cst_77 : f32 to vector<2x64xf32>
    %216 = arith.addf %214, %215 : vector<2x64xf32>
    %cst_78 = arith.constant 5.000000e-01 : f32
    %217 = vector.broadcast %cst_78 : f32 to vector<2x64xf32>
    %218 = arith.mulf %217, %216 : vector<2x64xf32>
    %219 = vector.extract_strided_slice %202 {offsets = [0, 128], sizes = [2, 64], strides = [1, 1]} : vector<2x256xf32> to vector<2x64xf32>
    %220 = math.tanh %219 : vector<2x64xf32>
    %221 = vector.extract_strided_slice %202 {offsets = [0, 192], sizes = [2, 64], strides = [1, 1]} : vector<2x256xf32> to vector<2x64xf32>
    %cst_79 = arith.constant 5.000000e-01 : f32
    %222 = vector.broadcast %cst_79 : f32 to vector<2x64xf32>
    %223 = arith.mulf %222, %221 : vector<2x64xf32>
    %224 = math.tanh %223 : vector<2x64xf32>
    %cst_80 = arith.constant 1.000000e+00 : f32
    %225 = vector.broadcast %cst_80 : f32 to vector<2x64xf32>
    %226 = arith.addf %224, %225 : vector<2x64xf32>
    %cst_81 = arith.constant 5.000000e-01 : f32
    %227 = vector.broadcast %cst_81 : f32 to vector<2x64xf32>
    %228 = arith.mulf %227, %226 : vector<2x64xf32>
    %229 = arith.mulf %218, %158 : vector<2x64xf32>
    %230 = arith.mulf %210, %220 : vector<2x64xf32>
    %231 = arith.addf %229, %230 : vector<2x64xf32>
    %232 = math.tanh %231 : vector<2x64xf32>
    %233 = arith.mulf %228, %232 : vector<2x64xf32>
    %234 = vector.extract_strided_slice %5 {offsets = [6, 0], sizes = [2, 256], strides = [1, 1]} : vector<16x256xf32> to vector<2x256xf32>
    %235 = arith.truncf %195 : vector<2x64xf32> to vector<2x64xbf16>
    %cst_82 = arith.constant dense<0.000000e+00> : vector<2x256xf32>
    %236 = tpu.matmul %235, %6, %cst_82 {dimension_numbers = #tpu.dot_dimension_numbers<[1], [0], [0], [1], [0, 0, 1, 1], [], []>} : vector<2x64xbf16>, vector<64x256xbf16>, vector<2x256xf32> -> vector<2x256xf32>
    %237 = arith.addf %234, %236 : vector<2x256xf32>
    %238 = vector.extract_strided_slice %237 {offsets = [0, 0], sizes = [2, 64], strides = [1, 1]} : vector<2x256xf32> to vector<2x64xf32>
    %cst_83 = arith.constant 5.000000e-01 : f32
    %239 = vector.broadcast %cst_83 : f32 to vector<2x64xf32>
    %240 = arith.mulf %239, %238 : vector<2x64xf32>
    %241 = math.tanh %240 : vector<2x64xf32>
    %cst_84 = arith.constant 1.000000e+00 : f32
    %242 = vector.broadcast %cst_84 : f32 to vector<2x64xf32>
    %243 = arith.addf %241, %242 : vector<2x64xf32>
    %cst_85 = arith.constant 5.000000e-01 : f32
    %244 = vector.broadcast %cst_85 : f32 to vector<2x64xf32>
    %245 = arith.mulf %244, %243 : vector<2x64xf32>
    %246 = vector.extract_strided_slice %237 {offsets = [0, 64], sizes = [2, 64], strides = [1, 1]} : vector<2x256xf32> to vector<2x64xf32>
    %cst_86 = arith.constant 5.000000e-01 : f32
    %247 = vector.broadcast %cst_86 : f32 to vector<2x64xf32>
    %248 = arith.mulf %247, %246 : vector<2x64xf32>
    %249 = math.tanh %248 : vector<2x64xf32>
    %cst_87 = arith.constant 1.000000e+00 : f32
    %250 = vector.broadcast %cst_87 : f32 to vector<2x64xf32>
    %251 = arith.addf %249, %250 : vector<2x64xf32>
    %cst_88 = arith.constant 5.000000e-01 : f32
    %252 = vector.broadcast %cst_88 : f32 to vector<2x64xf32>
    %253 = arith.mulf %252, %251 : vector<2x64xf32>
    %254 = vector.extract_strided_slice %237 {offsets = [0, 128], sizes = [2, 64], strides = [1, 1]} : vector<2x256xf32> to vector<2x64xf32>
    %255 = math.tanh %254 : vector<2x64xf32>
    %256 = vector.extract_strided_slice %237 {offsets = [0, 192], sizes = [2, 64], strides = [1, 1]} : vector<2x256xf32> to vector<2x64xf32>
    %cst_89 = arith.constant 5.000000e-01 : f32
    %257 = vector.broadcast %cst_89 : f32 to vector<2x64xf32>
    %258 = arith.mulf %257, %256 : vector<2x64xf32>
    %259 = math.tanh %258 : vector<2x64xf32>
    %cst_90 = arith.constant 1.000000e+00 : f32
    %260 = vector.broadcast %cst_90 : f32 to vector<2x64xf32>
    %261 = arith.addf %259, %260 : vector<2x64xf32>
    %cst_91 = arith.constant 5.000000e-01 : f32
    %262 = vector.broadcast %cst_91 : f32 to vector<2x64xf32>
    %263 = arith.mulf %262, %261 : vector<2x64xf32>
    %264 = arith.mulf %253, %193 : vector<2x64xf32>
    %265 = arith.mulf %245, %255 : vector<2x64xf32>
    %266 = arith.addf %264, %265 : vector<2x64xf32>
    %267 = math.tanh %266 : vector<2x64xf32>
    %268 = arith.mulf %263, %267 : vector<2x64xf32>
    %269 = arith.truncf %268 : vector<2x64xf32> to vector<2x64xbf16>
    %cst_92 = arith.constant dense<0.000000e+00> : vector<2x256xf32>
    %270 = tpu.matmul %269, %7, %cst_92 {dimension_numbers = #tpu.dot_dimension_numbers<[1], [0], [0], [1], [0, 0, 1, 1], [], []>} : vector<2x64xbf16>, vector<64x256xbf16>, vector<2x256xf32> -> vector<2x256xf32>
    %271 = arith.truncf %233 : vector<2x64xf32> to vector<2x64xbf16>
    %cst_93 = arith.constant dense<0.000000e+00> : vector<2x256xf32>
    %272 = tpu.matmul %271, %8, %cst_93 {dimension_numbers = #tpu.dot_dimension_numbers<[1], [0], [0], [1], [0, 0, 1, 1], [], []>} : vector<2x64xbf16>, vector<64x256xbf16>, vector<2x256xf32> -> vector<2x256xf32>
    %273 = arith.addf %270, %272 : vector<2x256xf32>
    %274 = vector.broadcast %9 : vector<1x256xf32> to vector<2x256xf32>
    %275 = arith.addf %273, %274 : vector<2x256xf32>
    %276 = vector.extract_strided_slice %275 {offsets = [0, 0], sizes = [2, 64], strides = [1, 1]} : vector<2x256xf32> to vector<2x64xf32>
    %cst_94 = arith.constant 5.000000e-01 : f32
    %277 = vector.broadcast %cst_94 : f32 to vector<2x64xf32>
    %278 = arith.mulf %277, %276 : vector<2x64xf32>
    %279 = math.tanh %278 : vector<2x64xf32>
    %cst_95 = arith.constant 1.000000e+00 : f32
    %280 = vector.broadcast %cst_95 : f32 to vector<2x64xf32>
    %281 = arith.addf %279, %280 : vector<2x64xf32>
    %cst_96 = arith.constant 5.000000e-01 : f32
    %282 = vector.broadcast %cst_96 : f32 to vector<2x64xf32>
    %283 = arith.mulf %282, %281 : vector<2x64xf32>
    %284 = vector.extract_strided_slice %275 {offsets = [0, 64], sizes = [2, 64], strides = [1, 1]} : vector<2x256xf32> to vector<2x64xf32>
    %cst_97 = arith.constant 5.000000e-01 : f32
    %285 = vector.broadcast %cst_97 : f32 to vector<2x64xf32>
    %286 = arith.mulf %285, %284 : vector<2x64xf32>
    %287 = math.tanh %286 : vector<2x64xf32>
    %cst_98 = arith.constant 1.000000e+00 : f32
    %288 = vector.broadcast %cst_98 : f32 to vector<2x64xf32>
    %289 = arith.addf %287, %288 : vector<2x64xf32>
    %cst_99 = arith.constant 5.000000e-01 : f32
    %290 = vector.broadcast %cst_99 : f32 to vector<2x64xf32>
    %291 = arith.mulf %290, %289 : vector<2x64xf32>
    %292 = vector.extract_strided_slice %275 {offsets = [0, 128], sizes = [2, 64], strides = [1, 1]} : vector<2x256xf32> to vector<2x64xf32>
    %293 = math.tanh %292 : vector<2x64xf32>
    %294 = vector.extract_strided_slice %275 {offsets = [0, 192], sizes = [2, 64], strides = [1, 1]} : vector<2x256xf32> to vector<2x64xf32>
    %cst_100 = arith.constant 5.000000e-01 : f32
    %295 = vector.broadcast %cst_100 : f32 to vector<2x64xf32>
    %296 = arith.mulf %295, %294 : vector<2x64xf32>
    %297 = math.tanh %296 : vector<2x64xf32>
    %cst_101 = arith.constant 1.000000e+00 : f32
    %298 = vector.broadcast %cst_101 : f32 to vector<2x64xf32>
    %299 = arith.addf %297, %298 : vector<2x64xf32>
    %cst_102 = arith.constant 5.000000e-01 : f32
    %300 = vector.broadcast %cst_102 : f32 to vector<2x64xf32>
    %301 = arith.mulf %300, %299 : vector<2x64xf32>
    %302 = arith.mulf %291, %231 : vector<2x64xf32>
    %303 = arith.mulf %283, %293 : vector<2x64xf32>
    %304 = arith.addf %302, %303 : vector<2x64xf32>
    %305 = math.tanh %304 : vector<2x64xf32>
    %306 = arith.mulf %301, %305 : vector<2x64xf32>
    %307 = vector.extract_strided_slice %5 {offsets = [8, 0], sizes = [2, 256], strides = [1, 1]} : vector<16x256xf32> to vector<2x256xf32>
    %308 = arith.truncf %268 : vector<2x64xf32> to vector<2x64xbf16>
    %cst_103 = arith.constant dense<0.000000e+00> : vector<2x256xf32>
    %309 = tpu.matmul %308, %6, %cst_103 {dimension_numbers = #tpu.dot_dimension_numbers<[1], [0], [0], [1], [0, 0, 1, 1], [], []>} : vector<2x64xbf16>, vector<64x256xbf16>, vector<2x256xf32> -> vector<2x256xf32>
    %310 = arith.addf %307, %309 : vector<2x256xf32>
    %311 = vector.extract_strided_slice %310 {offsets = [0, 0], sizes = [2, 64], strides = [1, 1]} : vector<2x256xf32> to vector<2x64xf32>
    %cst_104 = arith.constant 5.000000e-01 : f32
    %312 = vector.broadcast %cst_104 : f32 to vector<2x64xf32>
    %313 = arith.mulf %312, %311 : vector<2x64xf32>
    %314 = math.tanh %313 : vector<2x64xf32>
    %cst_105 = arith.constant 1.000000e+00 : f32
    %315 = vector.broadcast %cst_105 : f32 to vector<2x64xf32>
    %316 = arith.addf %314, %315 : vector<2x64xf32>
    %cst_106 = arith.constant 5.000000e-01 : f32
    %317 = vector.broadcast %cst_106 : f32 to vector<2x64xf32>
    %318 = arith.mulf %317, %316 : vector<2x64xf32>
    %319 = vector.extract_strided_slice %310 {offsets = [0, 64], sizes = [2, 64], strides = [1, 1]} : vector<2x256xf32> to vector<2x64xf32>
    %cst_107 = arith.constant 5.000000e-01 : f32
    %320 = vector.broadcast %cst_107 : f32 to vector<2x64xf32>
    %321 = arith.mulf %320, %319 : vector<2x64xf32>
    %322 = math.tanh %321 : vector<2x64xf32>
    %cst_108 = arith.constant 1.000000e+00 : f32
    %323 = vector.broadcast %cst_108 : f32 to vector<2x64xf32>
    %324 = arith.addf %322, %323 : vector<2x64xf32>
    %cst_109 = arith.constant 5.000000e-01 : f32
    %325 = vector.broadcast %cst_109 : f32 to vector<2x64xf32>
    %326 = arith.mulf %325, %324 : vector<2x64xf32>
    %327 = vector.extract_strided_slice %310 {offsets = [0, 128], sizes = [2, 64], strides = [1, 1]} : vector<2x256xf32> to vector<2x64xf32>
    %328 = math.tanh %327 : vector<2x64xf32>
    %329 = vector.extract_strided_slice %310 {offsets = [0, 192], sizes = [2, 64], strides = [1, 1]} : vector<2x256xf32> to vector<2x64xf32>
    %cst_110 = arith.constant 5.000000e-01 : f32
    %330 = vector.broadcast %cst_110 : f32 to vector<2x64xf32>
    %331 = arith.mulf %330, %329 : vector<2x64xf32>
    %332 = math.tanh %331 : vector<2x64xf32>
    %cst_111 = arith.constant 1.000000e+00 : f32
    %333 = vector.broadcast %cst_111 : f32 to vector<2x64xf32>
    %334 = arith.addf %332, %333 : vector<2x64xf32>
    %cst_112 = arith.constant 5.000000e-01 : f32
    %335 = vector.broadcast %cst_112 : f32 to vector<2x64xf32>
    %336 = arith.mulf %335, %334 : vector<2x64xf32>
    %337 = arith.mulf %326, %266 : vector<2x64xf32>
    %338 = arith.mulf %318, %328 : vector<2x64xf32>
    %339 = arith.addf %337, %338 : vector<2x64xf32>
    %340 = math.tanh %339 : vector<2x64xf32>
    %341 = arith.mulf %336, %340 : vector<2x64xf32>
    %342 = arith.truncf %341 : vector<2x64xf32> to vector<2x64xbf16>
    %cst_113 = arith.constant dense<0.000000e+00> : vector<2x256xf32>
    %343 = tpu.matmul %342, %7, %cst_113 {dimension_numbers = #tpu.dot_dimension_numbers<[1], [0], [0], [1], [0, 0, 1, 1], [], []>} : vector<2x64xbf16>, vector<64x256xbf16>, vector<2x256xf32> -> vector<2x256xf32>
    %344 = arith.truncf %306 : vector<2x64xf32> to vector<2x64xbf16>
    %cst_114 = arith.constant dense<0.000000e+00> : vector<2x256xf32>
    %345 = tpu.matmul %344, %8, %cst_114 {dimension_numbers = #tpu.dot_dimension_numbers<[1], [0], [0], [1], [0, 0, 1, 1], [], []>} : vector<2x64xbf16>, vector<64x256xbf16>, vector<2x256xf32> -> vector<2x256xf32>
    %346 = arith.addf %343, %345 : vector<2x256xf32>
    %347 = vector.broadcast %9 : vector<1x256xf32> to vector<2x256xf32>
    %348 = arith.addf %346, %347 : vector<2x256xf32>
    %349 = vector.extract_strided_slice %348 {offsets = [0, 0], sizes = [2, 64], strides = [1, 1]} : vector<2x256xf32> to vector<2x64xf32>
    %cst_115 = arith.constant 5.000000e-01 : f32
    %350 = vector.broadcast %cst_115 : f32 to vector<2x64xf32>
    %351 = arith.mulf %350, %349 : vector<2x64xf32>
    %352 = math.tanh %351 : vector<2x64xf32>
    %cst_116 = arith.constant 1.000000e+00 : f32
    %353 = vector.broadcast %cst_116 : f32 to vector<2x64xf32>
    %354 = arith.addf %352, %353 : vector<2x64xf32>
    %cst_117 = arith.constant 5.000000e-01 : f32
    %355 = vector.broadcast %cst_117 : f32 to vector<2x64xf32>
    %356 = arith.mulf %355, %354 : vector<2x64xf32>
    %357 = vector.extract_strided_slice %348 {offsets = [0, 64], sizes = [2, 64], strides = [1, 1]} : vector<2x256xf32> to vector<2x64xf32>
    %cst_118 = arith.constant 5.000000e-01 : f32
    %358 = vector.broadcast %cst_118 : f32 to vector<2x64xf32>
    %359 = arith.mulf %358, %357 : vector<2x64xf32>
    %360 = math.tanh %359 : vector<2x64xf32>
    %cst_119 = arith.constant 1.000000e+00 : f32
    %361 = vector.broadcast %cst_119 : f32 to vector<2x64xf32>
    %362 = arith.addf %360, %361 : vector<2x64xf32>
    %cst_120 = arith.constant 5.000000e-01 : f32
    %363 = vector.broadcast %cst_120 : f32 to vector<2x64xf32>
    %364 = arith.mulf %363, %362 : vector<2x64xf32>
    %365 = vector.extract_strided_slice %348 {offsets = [0, 128], sizes = [2, 64], strides = [1, 1]} : vector<2x256xf32> to vector<2x64xf32>
    %366 = math.tanh %365 : vector<2x64xf32>
    %367 = vector.extract_strided_slice %348 {offsets = [0, 192], sizes = [2, 64], strides = [1, 1]} : vector<2x256xf32> to vector<2x64xf32>
    %cst_121 = arith.constant 5.000000e-01 : f32
    %368 = vector.broadcast %cst_121 : f32 to vector<2x64xf32>
    %369 = arith.mulf %368, %367 : vector<2x64xf32>
    %370 = math.tanh %369 : vector<2x64xf32>
    %cst_122 = arith.constant 1.000000e+00 : f32
    %371 = vector.broadcast %cst_122 : f32 to vector<2x64xf32>
    %372 = arith.addf %370, %371 : vector<2x64xf32>
    %cst_123 = arith.constant 5.000000e-01 : f32
    %373 = vector.broadcast %cst_123 : f32 to vector<2x64xf32>
    %374 = arith.mulf %373, %372 : vector<2x64xf32>
    %375 = arith.mulf %364, %304 : vector<2x64xf32>
    %376 = arith.mulf %356, %366 : vector<2x64xf32>
    %377 = arith.addf %375, %376 : vector<2x64xf32>
    %378 = math.tanh %377 : vector<2x64xf32>
    %379 = arith.mulf %374, %378 : vector<2x64xf32>
    %380 = vector.extract_strided_slice %5 {offsets = [10, 0], sizes = [2, 256], strides = [1, 1]} : vector<16x256xf32> to vector<2x256xf32>
    %381 = arith.truncf %341 : vector<2x64xf32> to vector<2x64xbf16>
    %cst_124 = arith.constant dense<0.000000e+00> : vector<2x256xf32>
    %382 = tpu.matmul %381, %6, %cst_124 {dimension_numbers = #tpu.dot_dimension_numbers<[1], [0], [0], [1], [0, 0, 1, 1], [], []>} : vector<2x64xbf16>, vector<64x256xbf16>, vector<2x256xf32> -> vector<2x256xf32>
    %383 = arith.addf %380, %382 : vector<2x256xf32>
    %384 = vector.extract_strided_slice %383 {offsets = [0, 0], sizes = [2, 64], strides = [1, 1]} : vector<2x256xf32> to vector<2x64xf32>
    %cst_125 = arith.constant 5.000000e-01 : f32
    %385 = vector.broadcast %cst_125 : f32 to vector<2x64xf32>
    %386 = arith.mulf %385, %384 : vector<2x64xf32>
    %387 = math.tanh %386 : vector<2x64xf32>
    %cst_126 = arith.constant 1.000000e+00 : f32
    %388 = vector.broadcast %cst_126 : f32 to vector<2x64xf32>
    %389 = arith.addf %387, %388 : vector<2x64xf32>
    %cst_127 = arith.constant 5.000000e-01 : f32
    %390 = vector.broadcast %cst_127 : f32 to vector<2x64xf32>
    %391 = arith.mulf %390, %389 : vector<2x64xf32>
    %392 = vector.extract_strided_slice %383 {offsets = [0, 64], sizes = [2, 64], strides = [1, 1]} : vector<2x256xf32> to vector<2x64xf32>
    %cst_128 = arith.constant 5.000000e-01 : f32
    %393 = vector.broadcast %cst_128 : f32 to vector<2x64xf32>
    %394 = arith.mulf %393, %392 : vector<2x64xf32>
    %395 = math.tanh %394 : vector<2x64xf32>
    %cst_129 = arith.constant 1.000000e+00 : f32
    %396 = vector.broadcast %cst_129 : f32 to vector<2x64xf32>
    %397 = arith.addf %395, %396 : vector<2x64xf32>
    %cst_130 = arith.constant 5.000000e-01 : f32
    %398 = vector.broadcast %cst_130 : f32 to vector<2x64xf32>
    %399 = arith.mulf %398, %397 : vector<2x64xf32>
    %400 = vector.extract_strided_slice %383 {offsets = [0, 128], sizes = [2, 64], strides = [1, 1]} : vector<2x256xf32> to vector<2x64xf32>
    %401 = math.tanh %400 : vector<2x64xf32>
    %402 = vector.extract_strided_slice %383 {offsets = [0, 192], sizes = [2, 64], strides = [1, 1]} : vector<2x256xf32> to vector<2x64xf32>
    %cst_131 = arith.constant 5.000000e-01 : f32
    %403 = vector.broadcast %cst_131 : f32 to vector<2x64xf32>
    %404 = arith.mulf %403, %402 : vector<2x64xf32>
    %405 = math.tanh %404 : vector<2x64xf32>
    %cst_132 = arith.constant 1.000000e+00 : f32
    %406 = vector.broadcast %cst_132 : f32 to vector<2x64xf32>
    %407 = arith.addf %405, %406 : vector<2x64xf32>
    %cst_133 = arith.constant 5.000000e-01 : f32
    %408 = vector.broadcast %cst_133 : f32 to vector<2x64xf32>
    %409 = arith.mulf %408, %407 : vector<2x64xf32>
    %410 = arith.mulf %399, %339 : vector<2x64xf32>
    %411 = arith.mulf %391, %401 : vector<2x64xf32>
    %412 = arith.addf %410, %411 : vector<2x64xf32>
    %413 = math.tanh %412 : vector<2x64xf32>
    %414 = arith.mulf %409, %413 : vector<2x64xf32>
    %415 = arith.truncf %414 : vector<2x64xf32> to vector<2x64xbf16>
    %cst_134 = arith.constant dense<0.000000e+00> : vector<2x256xf32>
    %416 = tpu.matmul %415, %7, %cst_134 {dimension_numbers = #tpu.dot_dimension_numbers<[1], [0], [0], [1], [0, 0, 1, 1], [], []>} : vector<2x64xbf16>, vector<64x256xbf16>, vector<2x256xf32> -> vector<2x256xf32>
    %417 = arith.truncf %379 : vector<2x64xf32> to vector<2x64xbf16>
    %cst_135 = arith.constant dense<0.000000e+00> : vector<2x256xf32>
    %418 = tpu.matmul %417, %8, %cst_135 {dimension_numbers = #tpu.dot_dimension_numbers<[1], [0], [0], [1], [0, 0, 1, 1], [], []>} : vector<2x64xbf16>, vector<64x256xbf16>, vector<2x256xf32> -> vector<2x256xf32>
    %419 = arith.addf %416, %418 : vector<2x256xf32>
    %420 = vector.broadcast %9 : vector<1x256xf32> to vector<2x256xf32>
    %421 = arith.addf %419, %420 : vector<2x256xf32>
    %422 = vector.extract_strided_slice %421 {offsets = [0, 0], sizes = [2, 64], strides = [1, 1]} : vector<2x256xf32> to vector<2x64xf32>
    %cst_136 = arith.constant 5.000000e-01 : f32
    %423 = vector.broadcast %cst_136 : f32 to vector<2x64xf32>
    %424 = arith.mulf %423, %422 : vector<2x64xf32>
    %425 = math.tanh %424 : vector<2x64xf32>
    %cst_137 = arith.constant 1.000000e+00 : f32
    %426 = vector.broadcast %cst_137 : f32 to vector<2x64xf32>
    %427 = arith.addf %425, %426 : vector<2x64xf32>
    %cst_138 = arith.constant 5.000000e-01 : f32
    %428 = vector.broadcast %cst_138 : f32 to vector<2x64xf32>
    %429 = arith.mulf %428, %427 : vector<2x64xf32>
    %430 = vector.extract_strided_slice %421 {offsets = [0, 64], sizes = [2, 64], strides = [1, 1]} : vector<2x256xf32> to vector<2x64xf32>
    %cst_139 = arith.constant 5.000000e-01 : f32
    %431 = vector.broadcast %cst_139 : f32 to vector<2x64xf32>
    %432 = arith.mulf %431, %430 : vector<2x64xf32>
    %433 = math.tanh %432 : vector<2x64xf32>
    %cst_140 = arith.constant 1.000000e+00 : f32
    %434 = vector.broadcast %cst_140 : f32 to vector<2x64xf32>
    %435 = arith.addf %433, %434 : vector<2x64xf32>
    %cst_141 = arith.constant 5.000000e-01 : f32
    %436 = vector.broadcast %cst_141 : f32 to vector<2x64xf32>
    %437 = arith.mulf %436, %435 : vector<2x64xf32>
    %438 = vector.extract_strided_slice %421 {offsets = [0, 128], sizes = [2, 64], strides = [1, 1]} : vector<2x256xf32> to vector<2x64xf32>
    %439 = math.tanh %438 : vector<2x64xf32>
    %440 = vector.extract_strided_slice %421 {offsets = [0, 192], sizes = [2, 64], strides = [1, 1]} : vector<2x256xf32> to vector<2x64xf32>
    %cst_142 = arith.constant 5.000000e-01 : f32
    %441 = vector.broadcast %cst_142 : f32 to vector<2x64xf32>
    %442 = arith.mulf %441, %440 : vector<2x64xf32>
    %443 = math.tanh %442 : vector<2x64xf32>
    %cst_143 = arith.constant 1.000000e+00 : f32
    %444 = vector.broadcast %cst_143 : f32 to vector<2x64xf32>
    %445 = arith.addf %443, %444 : vector<2x64xf32>
    %cst_144 = arith.constant 5.000000e-01 : f32
    %446 = vector.broadcast %cst_144 : f32 to vector<2x64xf32>
    %447 = arith.mulf %446, %445 : vector<2x64xf32>
    %448 = arith.mulf %437, %377 : vector<2x64xf32>
    %449 = arith.mulf %429, %439 : vector<2x64xf32>
    %450 = arith.addf %448, %449 : vector<2x64xf32>
    %451 = math.tanh %450 : vector<2x64xf32>
    %452 = arith.mulf %447, %451 : vector<2x64xf32>
    %453 = vector.extract_strided_slice %5 {offsets = [12, 0], sizes = [2, 256], strides = [1, 1]} : vector<16x256xf32> to vector<2x256xf32>
    %454 = arith.truncf %414 : vector<2x64xf32> to vector<2x64xbf16>
    %cst_145 = arith.constant dense<0.000000e+00> : vector<2x256xf32>
    %455 = tpu.matmul %454, %6, %cst_145 {dimension_numbers = #tpu.dot_dimension_numbers<[1], [0], [0], [1], [0, 0, 1, 1], [], []>} : vector<2x64xbf16>, vector<64x256xbf16>, vector<2x256xf32> -> vector<2x256xf32>
    %456 = arith.addf %453, %455 : vector<2x256xf32>
    %457 = vector.extract_strided_slice %456 {offsets = [0, 0], sizes = [2, 64], strides = [1, 1]} : vector<2x256xf32> to vector<2x64xf32>
    %cst_146 = arith.constant 5.000000e-01 : f32
    %458 = vector.broadcast %cst_146 : f32 to vector<2x64xf32>
    %459 = arith.mulf %458, %457 : vector<2x64xf32>
    %460 = math.tanh %459 : vector<2x64xf32>
    %cst_147 = arith.constant 1.000000e+00 : f32
    %461 = vector.broadcast %cst_147 : f32 to vector<2x64xf32>
    %462 = arith.addf %460, %461 : vector<2x64xf32>
    %cst_148 = arith.constant 5.000000e-01 : f32
    %463 = vector.broadcast %cst_148 : f32 to vector<2x64xf32>
    %464 = arith.mulf %463, %462 : vector<2x64xf32>
    %465 = vector.extract_strided_slice %456 {offsets = [0, 64], sizes = [2, 64], strides = [1, 1]} : vector<2x256xf32> to vector<2x64xf32>
    %cst_149 = arith.constant 5.000000e-01 : f32
    %466 = vector.broadcast %cst_149 : f32 to vector<2x64xf32>
    %467 = arith.mulf %466, %465 : vector<2x64xf32>
    %468 = math.tanh %467 : vector<2x64xf32>
    %cst_150 = arith.constant 1.000000e+00 : f32
    %469 = vector.broadcast %cst_150 : f32 to vector<2x64xf32>
    %470 = arith.addf %468, %469 : vector<2x64xf32>
    %cst_151 = arith.constant 5.000000e-01 : f32
    %471 = vector.broadcast %cst_151 : f32 to vector<2x64xf32>
    %472 = arith.mulf %471, %470 : vector<2x64xf32>
    %473 = vector.extract_strided_slice %456 {offsets = [0, 128], sizes = [2, 64], strides = [1, 1]} : vector<2x256xf32> to vector<2x64xf32>
    %474 = math.tanh %473 : vector<2x64xf32>
    %475 = vector.extract_strided_slice %456 {offsets = [0, 192], sizes = [2, 64], strides = [1, 1]} : vector<2x256xf32> to vector<2x64xf32>
    %cst_152 = arith.constant 5.000000e-01 : f32
    %476 = vector.broadcast %cst_152 : f32 to vector<2x64xf32>
    %477 = arith.mulf %476, %475 : vector<2x64xf32>
    %478 = math.tanh %477 : vector<2x64xf32>
    %cst_153 = arith.constant 1.000000e+00 : f32
    %479 = vector.broadcast %cst_153 : f32 to vector<2x64xf32>
    %480 = arith.addf %478, %479 : vector<2x64xf32>
    %cst_154 = arith.constant 5.000000e-01 : f32
    %481 = vector.broadcast %cst_154 : f32 to vector<2x64xf32>
    %482 = arith.mulf %481, %480 : vector<2x64xf32>
    %483 = arith.mulf %472, %412 : vector<2x64xf32>
    %484 = arith.mulf %464, %474 : vector<2x64xf32>
    %485 = arith.addf %483, %484 : vector<2x64xf32>
    %486 = math.tanh %485 : vector<2x64xf32>
    %487 = arith.mulf %482, %486 : vector<2x64xf32>
    %488 = arith.truncf %487 : vector<2x64xf32> to vector<2x64xbf16>
    %cst_155 = arith.constant dense<0.000000e+00> : vector<2x256xf32>
    %489 = tpu.matmul %488, %7, %cst_155 {dimension_numbers = #tpu.dot_dimension_numbers<[1], [0], [0], [1], [0, 0, 1, 1], [], []>} : vector<2x64xbf16>, vector<64x256xbf16>, vector<2x256xf32> -> vector<2x256xf32>
    %490 = arith.truncf %452 : vector<2x64xf32> to vector<2x64xbf16>
    %cst_156 = arith.constant dense<0.000000e+00> : vector<2x256xf32>
    %491 = tpu.matmul %490, %8, %cst_156 {dimension_numbers = #tpu.dot_dimension_numbers<[1], [0], [0], [1], [0, 0, 1, 1], [], []>} : vector<2x64xbf16>, vector<64x256xbf16>, vector<2x256xf32> -> vector<2x256xf32>
    %492 = arith.addf %489, %491 : vector<2x256xf32>
    %493 = vector.broadcast %9 : vector<1x256xf32> to vector<2x256xf32>
    %494 = arith.addf %492, %493 : vector<2x256xf32>
    %495 = vector.extract_strided_slice %494 {offsets = [0, 0], sizes = [2, 64], strides = [1, 1]} : vector<2x256xf32> to vector<2x64xf32>
    %cst_157 = arith.constant 5.000000e-01 : f32
    %496 = vector.broadcast %cst_157 : f32 to vector<2x64xf32>
    %497 = arith.mulf %496, %495 : vector<2x64xf32>
    %498 = math.tanh %497 : vector<2x64xf32>
    %cst_158 = arith.constant 1.000000e+00 : f32
    %499 = vector.broadcast %cst_158 : f32 to vector<2x64xf32>
    %500 = arith.addf %498, %499 : vector<2x64xf32>
    %cst_159 = arith.constant 5.000000e-01 : f32
    %501 = vector.broadcast %cst_159 : f32 to vector<2x64xf32>
    %502 = arith.mulf %501, %500 : vector<2x64xf32>
    %503 = vector.extract_strided_slice %494 {offsets = [0, 64], sizes = [2, 64], strides = [1, 1]} : vector<2x256xf32> to vector<2x64xf32>
    %cst_160 = arith.constant 5.000000e-01 : f32
    %504 = vector.broadcast %cst_160 : f32 to vector<2x64xf32>
    %505 = arith.mulf %504, %503 : vector<2x64xf32>
    %506 = math.tanh %505 : vector<2x64xf32>
    %cst_161 = arith.constant 1.000000e+00 : f32
    %507 = vector.broadcast %cst_161 : f32 to vector<2x64xf32>
    %508 = arith.addf %506, %507 : vector<2x64xf32>
    %cst_162 = arith.constant 5.000000e-01 : f32
    %509 = vector.broadcast %cst_162 : f32 to vector<2x64xf32>
    %510 = arith.mulf %509, %508 : vector<2x64xf32>
    %511 = vector.extract_strided_slice %494 {offsets = [0, 128], sizes = [2, 64], strides = [1, 1]} : vector<2x256xf32> to vector<2x64xf32>
    %512 = math.tanh %511 : vector<2x64xf32>
    %513 = vector.extract_strided_slice %494 {offsets = [0, 192], sizes = [2, 64], strides = [1, 1]} : vector<2x256xf32> to vector<2x64xf32>
    %cst_163 = arith.constant 5.000000e-01 : f32
    %514 = vector.broadcast %cst_163 : f32 to vector<2x64xf32>
    %515 = arith.mulf %514, %513 : vector<2x64xf32>
    %516 = math.tanh %515 : vector<2x64xf32>
    %cst_164 = arith.constant 1.000000e+00 : f32
    %517 = vector.broadcast %cst_164 : f32 to vector<2x64xf32>
    %518 = arith.addf %516, %517 : vector<2x64xf32>
    %cst_165 = arith.constant 5.000000e-01 : f32
    %519 = vector.broadcast %cst_165 : f32 to vector<2x64xf32>
    %520 = arith.mulf %519, %518 : vector<2x64xf32>
    %521 = arith.mulf %510, %450 : vector<2x64xf32>
    %522 = arith.mulf %502, %512 : vector<2x64xf32>
    %523 = arith.addf %521, %522 : vector<2x64xf32>
    %524 = math.tanh %523 : vector<2x64xf32>
    %525 = arith.mulf %520, %524 : vector<2x64xf32>
    %526 = vector.extract_strided_slice %5 {offsets = [14, 0], sizes = [2, 256], strides = [1, 1]} : vector<16x256xf32> to vector<2x256xf32>
    %527 = arith.truncf %487 : vector<2x64xf32> to vector<2x64xbf16>
    %cst_166 = arith.constant dense<0.000000e+00> : vector<2x256xf32>
    %528 = tpu.matmul %527, %6, %cst_166 {dimension_numbers = #tpu.dot_dimension_numbers<[1], [0], [0], [1], [0, 0, 1, 1], [], []>} : vector<2x64xbf16>, vector<64x256xbf16>, vector<2x256xf32> -> vector<2x256xf32>
    %529 = arith.addf %526, %528 : vector<2x256xf32>
    %530 = vector.extract_strided_slice %529 {offsets = [0, 0], sizes = [2, 64], strides = [1, 1]} : vector<2x256xf32> to vector<2x64xf32>
    %cst_167 = arith.constant 5.000000e-01 : f32
    %531 = vector.broadcast %cst_167 : f32 to vector<2x64xf32>
    %532 = arith.mulf %531, %530 : vector<2x64xf32>
    %533 = math.tanh %532 : vector<2x64xf32>
    %cst_168 = arith.constant 1.000000e+00 : f32
    %534 = vector.broadcast %cst_168 : f32 to vector<2x64xf32>
    %535 = arith.addf %533, %534 : vector<2x64xf32>
    %cst_169 = arith.constant 5.000000e-01 : f32
    %536 = vector.broadcast %cst_169 : f32 to vector<2x64xf32>
    %537 = arith.mulf %536, %535 : vector<2x64xf32>
    %538 = vector.extract_strided_slice %529 {offsets = [0, 64], sizes = [2, 64], strides = [1, 1]} : vector<2x256xf32> to vector<2x64xf32>
    %cst_170 = arith.constant 5.000000e-01 : f32
    %539 = vector.broadcast %cst_170 : f32 to vector<2x64xf32>
    %540 = arith.mulf %539, %538 : vector<2x64xf32>
    %541 = math.tanh %540 : vector<2x64xf32>
    %cst_171 = arith.constant 1.000000e+00 : f32
    %542 = vector.broadcast %cst_171 : f32 to vector<2x64xf32>
    %543 = arith.addf %541, %542 : vector<2x64xf32>
    %cst_172 = arith.constant 5.000000e-01 : f32
    %544 = vector.broadcast %cst_172 : f32 to vector<2x64xf32>
    %545 = arith.mulf %544, %543 : vector<2x64xf32>
    %546 = vector.extract_strided_slice %529 {offsets = [0, 128], sizes = [2, 64], strides = [1, 1]} : vector<2x256xf32> to vector<2x64xf32>
    %547 = math.tanh %546 : vector<2x64xf32>
    %548 = vector.extract_strided_slice %529 {offsets = [0, 192], sizes = [2, 64], strides = [1, 1]} : vector<2x256xf32> to vector<2x64xf32>
    %cst_173 = arith.constant 5.000000e-01 : f32
    %549 = vector.broadcast %cst_173 : f32 to vector<2x64xf32>
    %550 = arith.mulf %549, %548 : vector<2x64xf32>
    %551 = math.tanh %550 : vector<2x64xf32>
    %cst_174 = arith.constant 1.000000e+00 : f32
    %552 = vector.broadcast %cst_174 : f32 to vector<2x64xf32>
    %553 = arith.addf %551, %552 : vector<2x64xf32>
    %cst_175 = arith.constant 5.000000e-01 : f32
    %554 = vector.broadcast %cst_175 : f32 to vector<2x64xf32>
    %555 = arith.mulf %554, %553 : vector<2x64xf32>
    %556 = arith.mulf %545, %485 : vector<2x64xf32>
    %557 = arith.mulf %537, %547 : vector<2x64xf32>
    %558 = arith.addf %556, %557 : vector<2x64xf32>
    %559 = math.tanh %558 : vector<2x64xf32>
    %560 = arith.mulf %555, %559 : vector<2x64xf32>
    %561 = arith.truncf %560 : vector<2x64xf32> to vector<2x64xbf16>
    %cst_176 = arith.constant dense<0.000000e+00> : vector<2x256xf32>
    %562 = tpu.matmul %561, %7, %cst_176 {dimension_numbers = #tpu.dot_dimension_numbers<[1], [0], [0], [1], [0, 0, 1, 1], [], []>} : vector<2x64xbf16>, vector<64x256xbf16>, vector<2x256xf32> -> vector<2x256xf32>
    %563 = arith.truncf %525 : vector<2x64xf32> to vector<2x64xbf16>
    %cst_177 = arith.constant dense<0.000000e+00> : vector<2x256xf32>
    %564 = tpu.matmul %563, %8, %cst_177 {dimension_numbers = #tpu.dot_dimension_numbers<[1], [0], [0], [1], [0, 0, 1, 1], [], []>} : vector<2x64xbf16>, vector<64x256xbf16>, vector<2x256xf32> -> vector<2x256xf32>
    %565 = arith.addf %562, %564 : vector<2x256xf32>
    %566 = vector.broadcast %9 : vector<1x256xf32> to vector<2x256xf32>
    %567 = arith.addf %565, %566 : vector<2x256xf32>
    %568 = vector.extract_strided_slice %567 {offsets = [0, 0], sizes = [2, 64], strides = [1, 1]} : vector<2x256xf32> to vector<2x64xf32>
    %cst_178 = arith.constant 5.000000e-01 : f32
    %569 = vector.broadcast %cst_178 : f32 to vector<2x64xf32>
    %570 = arith.mulf %569, %568 : vector<2x64xf32>
    %571 = math.tanh %570 : vector<2x64xf32>
    %cst_179 = arith.constant 1.000000e+00 : f32
    %572 = vector.broadcast %cst_179 : f32 to vector<2x64xf32>
    %573 = arith.addf %571, %572 : vector<2x64xf32>
    %cst_180 = arith.constant 5.000000e-01 : f32
    %574 = vector.broadcast %cst_180 : f32 to vector<2x64xf32>
    %575 = arith.mulf %574, %573 : vector<2x64xf32>
    %576 = vector.extract_strided_slice %567 {offsets = [0, 64], sizes = [2, 64], strides = [1, 1]} : vector<2x256xf32> to vector<2x64xf32>
    %cst_181 = arith.constant 5.000000e-01 : f32
    %577 = vector.broadcast %cst_181 : f32 to vector<2x64xf32>
    %578 = arith.mulf %577, %576 : vector<2x64xf32>
    %579 = math.tanh %578 : vector<2x64xf32>
    %cst_182 = arith.constant 1.000000e+00 : f32
    %580 = vector.broadcast %cst_182 : f32 to vector<2x64xf32>
    %581 = arith.addf %579, %580 : vector<2x64xf32>
    %cst_183 = arith.constant 5.000000e-01 : f32
    %582 = vector.broadcast %cst_183 : f32 to vector<2x64xf32>
    %583 = arith.mulf %582, %581 : vector<2x64xf32>
    %584 = vector.extract_strided_slice %567 {offsets = [0, 128], sizes = [2, 64], strides = [1, 1]} : vector<2x256xf32> to vector<2x64xf32>
    %585 = math.tanh %584 : vector<2x64xf32>
    %586 = vector.extract_strided_slice %567 {offsets = [0, 192], sizes = [2, 64], strides = [1, 1]} : vector<2x256xf32> to vector<2x64xf32>
    %cst_184 = arith.constant 5.000000e-01 : f32
    %587 = vector.broadcast %cst_184 : f32 to vector<2x64xf32>
    %588 = arith.mulf %587, %586 : vector<2x64xf32>
    %589 = math.tanh %588 : vector<2x64xf32>
    %cst_185 = arith.constant 1.000000e+00 : f32
    %590 = vector.broadcast %cst_185 : f32 to vector<2x64xf32>
    %591 = arith.addf %589, %590 : vector<2x64xf32>
    %cst_186 = arith.constant 5.000000e-01 : f32
    %592 = vector.broadcast %cst_186 : f32 to vector<2x64xf32>
    %593 = arith.mulf %592, %591 : vector<2x64xf32>
    %594 = arith.mulf %583, %523 : vector<2x64xf32>
    %595 = arith.mulf %575, %585 : vector<2x64xf32>
    %596 = arith.addf %594, %595 : vector<2x64xf32>
    %597 = math.tanh %596 : vector<2x64xf32>
    %598 = arith.mulf %593, %597 : vector<2x64xf32>
    %599 = vector.broadcast %10 : vector<1x64xf32> to vector<2x64xf32>
    %600 = arith.mulf %598, %599 : vector<2x64xf32>
    %cst_187 = arith.constant dense<0.000000e+00> : vector<2xf32>
    %601 = vector.multi_reduction <add>, %600, %cst_187 [1] : vector<2x64xf32> to vector<2xf32>
    %602 = vector.shape_cast %601 : vector<2xf32> to vector<2x1xf32>
    %c0_188 = arith.constant 0 : index
    %c0_189 = arith.constant 0 : index
    %603 = vector.load %arg9[%c0_188, %c0_189] : memref<1x1xf32, #tpu.memory_space<vmem>>, vector<1x1xf32>
    %604 = vector.broadcast %603 : vector<1x1xf32> to vector<2x1xf32>
    %605 = arith.addf %602, %604 : vector<2x1xf32>
    %cst_190 = arith.constant 5.000000e-01 : f32
    %606 = vector.broadcast %cst_190 : f32 to vector<2x1xf32>
    %607 = arith.mulf %606, %605 : vector<2x1xf32>
    %608 = math.tanh %607 : vector<2x1xf32>
    %cst_191 = arith.constant 1.000000e+00 : f32
    %609 = vector.broadcast %cst_191 : f32 to vector<2x1xf32>
    %610 = arith.addf %608, %609 : vector<2x1xf32>
    %cst_192 = arith.constant 5.000000e-01 : f32
    %611 = vector.broadcast %cst_192 : f32 to vector<2x1xf32>
    %612 = arith.mulf %611, %610 : vector<2x1xf32>
    %613 = vector.shape_cast %612 : vector<2x1xf32> to vector<2x1xf32>
    %614 = vector.broadcast %613 : vector<2x1xf32> to vector<2x128xf32>
    %c0_193 = arith.constant 0 : index
    %c0_194 = arith.constant 0 : index
    %615 = vector.load %arg10[%c0_193, %c0_194] : memref<2x128xf32, #tpu.memory_space<vmem>>, vector<2x128xf32>
    tpu.vector_store %arg10[%c0_193, %c0_194], %614 {strides = array<i32>} : memref<2x128xf32, #tpu.memory_space<vmem>>, vector<2x128xf32>,
    return
  }
  func.func @transform_0(%arg0: i32) -> (i32, i32) {
    %c0_i32 = arith.constant 0 : i32
    %c0_i32_0 = arith.constant 0 : i32
    %c0_i32_1 = arith.constant 0 : i32
    return %c0_i32, %c0_i32_0 : i32, i32
  }
  func.func @transform_1(%arg0: i32) -> (i32, i32) {
    %c0_i32 = arith.constant 0 : i32
    %c0_i32_0 = arith.constant 0 : i32
    %c0_i32_1 = arith.constant 0 : i32
    return %c0_i32, %c0_i32_0 : i32, i32
  }
  func.func @transform_2(%arg0: i32) -> (i32, i32) {
    %c0_i32 = arith.constant 0 : i32
    %c0_i32_0 = arith.constant 0 : i32
    %c0_i32_1 = arith.constant 0 : i32
    return %c0_i32, %c0_i32_0 : i32, i32
  }
  func.func @transform_3(%arg0: i32) -> (i32, i32) {
    %c0_i32 = arith.constant 0 : i32
    %c0_i32_0 = arith.constant 0 : i32
    %c0_i32_1 = arith.constant 0 : i32
    return %c0_i32, %c0_i32_0 : i32, i32
  }
  func.func @transform_4(%arg0: i32) -> (i32, i32) {
    %c0_i32 = arith.constant 0 : i32
    %c0_i32_0 = arith.constant 0 : i32
    %c0_i32_1 = arith.constant 0 : i32
    return %c0_i32, %c0_i32_0 : i32, i32
  }
  func.func @transform_5(%arg0: i32) -> (i32, i32) {
    %c0_i32 = arith.constant 0 : i32
    %c0_i32_0 = arith.constant 0 : i32
    %c0_i32_1 = arith.constant 0 : i32
    return %c0_i32, %c0_i32_0 : i32, i32
  }
  func.func @transform_6(%arg0: i32) -> (i32, i32) {
    %c0_i32 = arith.constant 0 : i32
    %c0_i32_0 = arith.constant 0 : i32
    %c0_i32_1 = arith.constant 0 : i32
    return %c0_i32, %c0_i32_0 : i32, i32
  }
  func.func @transform_7(%arg0: i32) -> (i32, i32) {
    %c0_i32 = arith.constant 0 : i32
    %c0_i32_0 = arith.constant 0 : i32
    %c0_i32_1 = arith.constant 0 : i32
    return %c0_i32, %c0_i32_0 : i32, i32
  }
  func.func @transform_8(%arg0: i32) -> (i32, i32) {
    %c0_i32 = arith.constant 0 : i32
    %c0_i32_0 = arith.constant 0 : i32
    %c0_i32_1 = arith.constant 0 : i32
    return %c0_i32, %c0_i32_0 : i32, i32
  }
  func.func @transform_9(%arg0: i32) -> (i32, i32) {
    %c0_i32 = arith.constant 0 : i32
    %c0_i32_0 = arith.constant 0 : i32
    %c0_i32_1 = arith.constant 0 : i32
    return %c0_i32, %c0_i32_0 : i32, i32
  }
}

</mosaic_0001>

<llo_original>
// kernel: tpu_custom_call.1
$region0: #{tpu_custom_call.1}
  #allocation0 [shape = 'u32[]', space=smem, size = 0x4, offset = 0x4, fixed_abs, tag = 'smem constant byte address 0x4 - core index']
  #allocation1 [shape = 'u32[144,128]{1,0:T(1,128)}', space=vmem, size = 0x12000, scoped, tag = 'internal scratch']
  #allocation2 [shape = 'f32[1,1]{1,0:T(1,128)S(1)}', space=vmem, size = 0x200, scoped, tag = 'scoped memory for tpu_custom_call.1']
  %s0 = inlined_call_operand.hbm [shape: f32[16,128], index: 0, kind: input, shape index: {}]
  %s1 = inlined_call_operand.hbm [shape: f32[128,256], index: 1, kind: input, shape index: {}]
  %s2 = inlined_call_operand.vmem [shape: f32[1,256], index: 2, kind: input, shape index: {}]
  %s3 = inlined_call_operand.hbm [shape: bf16[64,256], index: 3, kind: input, shape index: {}]
  %s4 = inlined_call_operand.hbm [shape: bf16[64,256], index: 4, kind: input, shape index: {}]
  %s5 = inlined_call_operand.hbm [shape: bf16[64,256], index: 5, kind: input, shape index: {}]
  %s6 = inlined_call_operand.vmem [shape: f32[1,256], index: 6, kind: input, shape index: {}]
  %s7 = inlined_call_operand.vmem [shape: f32[1,64], index: 7, kind: input, shape index: {}]
  %s8 = inlined_call_operand.<no memory space> [shape: f32[1,1], index: 8, kind: input, shape index: {}]
  %s9 = inlined_call_operand.hbm [shape: f32[2,128], index: 9, kind: output, shape index: {}]
  %s10 = sld [smem:[#allocation0]]
  $region66: #{tpu_custom_call.1} parent=0
    _
  %s12 = ssub.s32 1, %s10
  %s13 = scalar_select 0, %s12, %s10
  %v14 = vstv %s8
  %15 = vst [vmem:[#allocation2] sm:$0x1] %v14
  $region1: #{tpu_custom_call.1} parent=0
    #allocation3 [shape = 'u8[8192]{0}', space=vmem, size = 0x2000, scoped, tag = 'input window, operand 0, single buffered']
    #allocation4 [shape = 's32[1]{0}', space=sflag, size = 0x4, scoped, tag = 'scoped memory for tpu_custom_call.1']
    #allocation5 [shape = 's32[1]{0}', space=sflag, size = 0x4, scoped, tag = 'scoped memory for tpu_custom_call.1']
    #allocation6 [shape = 'u8[131072]{0}', space=vmem, size = 0x20000, scoped, tag = 'input window, operand 1, single buffered']
    #allocation7 [shape = 's32[1]{0}', space=sflag, size = 0x4, scoped, tag = 'scoped memory for tpu_custom_call.1']
    #allocation8 [shape = 'u8[32768]{0}', space=vmem, size = 0x8000, scoped, tag = 'input window, operand 3, single buffered']
    #allocation9 [shape = 'u8[32768]{0}', space=vmem, size = 0x8000, scoped, tag = 'input window, operand 4, single buffered']
    #allocation10 [shape = 's32[1]{0}', space=sflag, size = 0x4, scoped, tag = 'scoped memory for tpu_custom_call.1']
    #allocation11 [shape = 'u8[32768]{0}', space=vmem, size = 0x8000, scoped, tag = 'input window, operand 5, single buffered']
    #allocation12 [shape = 'u8[1024]{0}', space=vmem, size = 0x400, scoped, tag = 'output window, operand 0, single buffered']
    %16 = vsyncpa [#allocation4], 0
    %17 = vsyncpa [#allocation7], 0
    %18 = vsyncpa [#allocation10], 0
    %19 = vsyncpa [#allocation5], 0
    // Predicated region
    $region2: #{tpu_custom_call.1} parent=1 // pred_check
      _
    $region3: #{tpu_custom_call.1} parent=1 // pred_check_branch
      %21 = sbr.rel (0) target = $region5
    $region4: #{tpu_custom_call.1} parent=1 // pred_region
      %s23 = ssub.s32 256, 256
      %24 = vsyncadd [#allocation4], %s23
      %s25 = sshll.u32 [#allocation3], 4
      %s26 = int_to_ptr.vmem [resolvable:$true] %s25
      %31 = dma.hbm_to_vmem [thread:$0]  %s0, 256, %s26, [#allocation4], 128, 128, 8
    $region5: #{tpu_custom_call.1} parent=1 // pred_fallthru
      _
    // Predicated region
    $region6: #{tpu_custom_call.1} parent=1 // pred_check
      _
    $region7: #{tpu_custom_call.1} parent=1 // pred_check_branch
      %33 = sbr.rel (0) target = $region9
    $region8: #{tpu_custom_call.1} parent=1 // pred_region
      %s35 = ssub.s32 4096, 4096
      %36 = vsyncadd [#allocation7], %s35
      %s37 = sshll.u32 [#allocation6], 4
      %s38 = int_to_ptr.vmem [resolvable:$true] %s37
      %43 = dma.hbm_to_vmem [thread:$0]  %s1, 4096, %s38, [#allocation7], 256, 256, 16
    $region9: #{tpu_custom_call.1} parent=1 // pred_fallthru
      _
    // Predicated region
    $region10: #{tpu_custom_call.1} parent=1 // pred_check
      _
    $region11: #{tpu_custom_call.1} parent=1 // pred_check_branch
      %45 = sbr.rel (0) target = $region13
    $region12: #{tpu_custom_call.1} parent=1 // pred_region
      _
    $region13: #{tpu_custom_call.1} parent=1 // pred_fallthru
      _
    // Predicated region
    $region14: #{tpu_custom_call.1} parent=1 // pred_check
      _
    $region15: #{tpu_custom_call.1} parent=1 // pred_check_branch
      %47 = sbr.rel (0) target = $region17
    $region16: #{tpu_custom_call.1} parent=1 // pred_region
      %s49 = ssub.s32 1024, 1024
      %50 = vsyncadd [#allocation7], %s49
      %s51 = sshll.u32 [#allocation8], 4
      %s52 = int_to_ptr.vmem [resolvable:$true] %s51
      %57 = dma.hbm_to_vmem [thread:$0]  %s3, 1024, %s52, [#allocation7], 128, 128, 8
    $region17: #{tpu_custom_call.1} parent=1 // pred_fallthru
      _
    // Predicated region
    $region18: #{tpu_custom_call.1} parent=1 // pred_check
      _
    $region19: #{tpu_custom_call.1} parent=1 // pred_check_branch
      %59 = sbr.rel (0) target = $region21
    $region20: #{tpu_custom_call.1} parent=1 // pred_region
      %s61 = ssub.s32 1024, 1024
      %62 = vsyncadd [#allocation10], %s61
      %s63 = sshll.u32 [#allocation9], 4
      %s64 = int_to_ptr.vmem [resolvable:$true] %s63
      %69 = dma.hbm_to_vmem [thread:$0]  %s4, 1024, %s64, [#allocation10], 128, 128, 8
    $region21: #{tpu_custom_call.1} parent=1 // pred_fallthru
      _
    // Predicated region
    $region22: #{tpu_custom_call.1} parent=1 // pred_check
      _
    $region23: #{tpu_custom_call.1} parent=1 // pred_check_branch
      %71 = sbr.rel (0) target = $region25
    $region24: #{tpu_custom_call.1} parent=1 // pred_region
      %s73 = ssub.s32 1024, 1024
      %74 = vsyncadd [#allocation10], %s73
      %s75 = sshll.u32 [#allocation11], 4
      %s76 = int_to_ptr.vmem [resolvable:$true] %s75
      %81 = dma.hbm_to_vmem [thread:$0]  %s5, 1024, %s76, [#allocation10], 128, 128, 8
    $region25: #{tpu_custom_call.1} parent=1 // pred_fallthru
      _
    // Predicated region
    $region26: #{tpu_custom_call.1} parent=1 // pred_check
      _
    $region27: #{tpu_custom_call.1} parent=1 // pred_check_branch
      %83 = sbr.rel (0) target = $region29
    $region28: #{tpu_custom_call.1} parent=1 // pred_region
      _
    $region29: #{tpu_custom_call.1} parent=1 // pred_fallthru
      _
    // Predicated region
    $region30: #{tpu_custom_call.1} parent=1 // pred_check
      _
    $region31: #{tpu_custom_call.1} parent=1 // pred_check_branch
      %85 = sbr.rel (0) target = $region33
    $region32: #{tpu_custom_call.1} parent=1 // pred_region
      _
    $region33: #{tpu_custom_call.1} parent=1 // pred_fallthru
      _
    // Predicated region
    $region34: #{tpu_custom_call.1} parent=1 // pred_check
      _
    $region35: #{tpu_custom_call.1} parent=1 // pred_check_branch
      %87 = sbr.rel (0) target = $region37
    $region36: #{tpu_custom_call.1} parent=1 // pred_region
      _
    $region37: #{tpu_custom_call.1} parent=1 // pred_fallthru
      _
    // Predicated region
    $region38: #{tpu_custom_call.1} parent=1 // pred_check
      _
    $region39: #{tpu_custom_call.1} parent=1 // pred_check_branch
      %89 = sbr.rel (0) target = $region41
    $region40: #{tpu_custom_call.1} parent=1 // pred_region
      %90 = dma.done [#allocation4], 256
    $region41: #{tpu_custom_call.1} parent=1 // pred_fallthru
      _
    // Predicated region
    $region42: #{tpu_custom_call.1} parent=1 // pred_check
      _
    $region43: #{tpu_custom_call.1} parent=1 // pred_check_branch
      %92 = sbr.rel (0) target = $region45
    $region44: #{tpu_custom_call.1} parent=1 // pred_region
      %93 = dma.done [#allocation7], 4096
    $region45: #{tpu_custom_call.1} parent=1 // pred_fallthru
      _
    // Predicated region
    $region46: #{tpu_custom_call.1} parent=1 // pred_check
      _
    $region47: #{tpu_custom_call.1} parent=1 // pred_check_branch
      %95 = sbr.rel (0) target = $region49
    $region48: #{tpu_custom_call.1} parent=1 // pred_region
      %96 = dma.done [#allocation7], 1024
    $region49: #{tpu_custom_call.1} parent=1 // pred_fallthru
      _
    // Predicated region
    $region50: #{tpu_custom_call.1} parent=1 // pred_check
      _
    $region51: #{tpu_custom_call.1} parent=1 // pred_check_branch
      %98 = sbr.rel (0) target = $region53
    $region52: #{tpu_custom_call.1} parent=1 // pred_region
      %99 = dma.done [#allocation10], 1024
    $region53: #{tpu_custom_call.1} parent=1 // pred_fallthru
      _
    // Predicated region
    $region54: #{tpu_custom_call.1} parent=1 // pred_check
      _
    $region55: #{tpu_custom_call.1} parent=1 // pred_check_branch
      %101 = sbr.rel (0) target = $region57
    $region56: #{tpu_custom_call.1} parent=1 // pred_region
      %102 = dma.done [#allocation10], 1024
    $region57: #{tpu_custom_call.1} parent=1 // pred_fallthru
      _
    %v104 = vld [vmem:[#allocation3] sm:$0xff]
    %v105 = vld [vmem:[#allocation3 + $0x8] sm:$0xff]
    %v106 = vld [vmem:[#allocation6] sm:$0xff]
    %v107 = vld [vmem:[#allocation6 + $0x8] sm:$0xff]
    %v108 = vld [vmem:[#allocation6 + $0x10] sm:$0xff]
    %v109 = vld [vmem:[#allocation6 + $0x18] sm:$0xff]
    %v110 = vld [vmem:[#allocation6 + $0x20] sm:$0xff]
    %v111 = vld [vmem:[#allocation6 + $0x28] sm:$0xff]
    %v112 = vld [vmem:[#allocation6 + $0x30] sm:$0xff]
    %v113 = vld [vmem:[#allocation6 + $0x38] sm:$0xff]
    %v114 = vld [vmem:[#allocation6 + $0x40] sm:$0xff]
    %v115 = vld [vmem:[#allocation6 + $0x48] sm:$0xff]
    %v116 = vld [vmem:[#allocation6 + $0x50] sm:$0xff]
    %v117 = vld [vmem:[#allocation6 + $0x58] sm:$0xff]
    %v118 = vld [vmem:[#allocation6 + $0x60] sm:$0xff]
    %v119 = vld [vmem:[#allocation6 + $0x68] sm:$0xff]
    %v120 = vld [vmem:[#allocation6 + $0x70] sm:$0xff]
    %v121 = vld [vmem:[#allocation6 + $0x78] sm:$0xff]
    %v122 = vld [vmem:[#allocation6 + $0x80] sm:$0xff]
    %v123 = vld [vmem:[#allocation6 + $0x88] sm:$0xff]
    %v124 = vld [vmem:[#allocation6 + $0x90] sm:$0xff]
    %v125 = vld [vmem:[#allocation6 + $0x98] sm:$0xff]
    %v126 = vld [vmem:[#allocation6 + $0xa0] sm:$0xff]
    %v127 = vld [vmem:[#allocation6 + $0xa8] sm:$0xff]
    %v128 = vld [vmem:[#allocation6 + $0xb0] sm:$0xff]
    %v129 = vld [vmem:[#allocation6 + $0xb8] sm:$0xff]
    %v130 = vld [vmem:[#allocation6 + $0xc0] sm:$0xff]
    %v131 = vld [vmem:[#allocation6 + $0xc8] sm:$0xff]
    %v132 = vld [vmem:[#allocation6 + $0xd0] sm:$0xff]
    %v133 = vld [vmem:[#allocation6 + $0xd8] sm:$0xff]
    %v134 = vld [vmem:[#allocation6 + $0xe0] sm:$0xff]
    %v135 = vld [vmem:[#allocation6 + $0xe8] sm:$0xff]
    %v136 = vld [vmem:[#allocation6 + $0xf0] sm:$0xff]
    %v137 = vld [vmem:[#allocation6 + $0xf8] sm:$0xff]
    %v138 = vld [vmem:[%s2] sm:$0x3]
    %v140 = vlaneseq
    %v141 = vshrl.u32 %v140, 7
    %v142 = vsub.s32 0, %v141
    %v143 = vrot.slane %v138, %v142
    %v144 = vlaneseq
    %v145 = vshrl.u32 %v144, 7
    %v146 = vsub.s32 1, %v145
    %v147 = vrot.slane %v138, %v146
    %150 = vmatprep.subr.mxu0 %v107
    %151 = vmatpush1.msra.mxu0 %v106
    %152 = vmatprep.subr.mxu0 %v109
    %153 = vmatpush1.msra.mxu0 %v108
    %154 = vmatprep.subr.mxu0 %v111
    %155 = vmatpush1.msra.mxu0 %v110
    %156 = vmatprep.subr.mxu0 %v113
    %157 = vmatpush1.msra.mxu0 %v112
    %158 = vmatprep.subr.mxu0 %v115
    %159 = vmatpush1.msra.mxu0 %v114
    %160 = vmatprep.subr.mxu0 %v117
    %161 = vmatpush1.msra.mxu0 %v116
    %162 = vmatprep.subr.mxu0 %v119
    %163 = vmatpush1.msra.mxu0 %v118
    %164 = vmatprep.subr.mxu0 %v121
    %165 = vmatpush1.msra.mxu0 %v120
    %166 = vmatprep.subr.mxu0 %v123
    %167 = vmatpush1.msra.mxu0 %v122
    %168 = vmatprep.subr.mxu0 %v125
    %169 = vmatpush1.msra.mxu0 %v124
    %170 = vmatprep.subr.mxu0 %v127
    %171 = vmatpush1.msra.mxu0 %v126
    %172 = vmatprep.subr.mxu0 %v129
    %173 = vmatpush1.msra.mxu0 %v128
    %174 = vmatprep.subr.mxu0 %v131
    %175 = vmatpush1.msra.mxu0 %v130
    %176 = vmatprep.subr.mxu0 %v133
    %177 = vmatpush1.msra.mxu0 %v132
    %178 = vmatprep.subr.mxu0 %v135
    %179 = vmatpush1.msra.mxu0 %v134
    %180 = vmatprep.subr.mxu0 %v137
    %181 = vmatpush1.msra.mxu0 %v136
    %182 = vmatprep.subr.mxu0 0.0
    %183 = vmatpush1.msra.mxu0 0.0
    %184 = vmatprep.subr.mxu0 0.0
    %185 = vmatpush1.msra.mxu0 0.0
    %186 = vmatprep.subr.mxu0 0.0
    %187 = vmatpush1.msra.mxu0 0.0
    %188 = vmatprep.subr.mxu0 0.0
    %189 = vmatpush1.msra.mxu0 0.0
    %190 = vmatprep.subr.mxu0 0.0
    %191 = vmatpush1.msra.mxu0 0.0
    %192 = vmatprep.subr.mxu0 0.0
    %193 = vmatpush1.msra.mxu0 0.0
    %194 = vmatprep.subr.mxu0 0.0
    %195 = vmatpush1.msra.mxu0 0.0
    %196 = vmatprep.subr.mxu0 0.0
    %197 = vmatpush1.msra.mxu0 0.0
    %198 = vmatprep.subr.mxu0 0.0
    %199 = vmatpush1.msra.mxu0 0.0
    %200 = vmatprep.subr.mxu0 0.0
    %201 = vmatpush1.msra.mxu0 0.0
    %202 = vmatprep.subr.mxu0 0.0
    %203 = vmatpush1.msra.mxu0 0.0
    %204 = vmatprep.subr.mxu0 0.0
    %205 = vmatpush1.msra.mxu0 0.0
    %206 = vmatprep.subr.mxu0 0.0
    %207 = vmatpush1.msra.mxu0 0.0
    %208 = vmatprep.subr.mxu0 0.0
    %209 = vmatpush1.msra.mxu0 0.0
    %210 = vmatprep.subr.mxu0 0.0
    %211 = vmatpush1.msra.mxu0 0.0
    %212 = vmatprep.subr.mxu0 0.0
    %213 = vmatpush1.msra.mxu0 0.0
    %214 = vmatprep.mubr.f32.mxu0 0.0
    %215 = vmatmul.mubr.f32.gmra.mrb[0].mxu0 %v104
    %v216 = vpop.f32.mrb[0].mxu0
    %v217 = vadd.f32 %v143, %v216
    %v218 = vpop.f32.mrb[0].mxu0
    %v219 = vadd.f32 %v147, %v218
    %220 = vmatprep.mubr.f32.mxu0 0.0
    %221 = vmatmul.mubr.f32.gmra.mrb[0].mxu0 %v105
    %v222 = vpop.f32.mrb[0].mxu0
    %v223 = vadd.f32 %v143, %v222
    %v224 = vpop.f32.mrb[0].mxu0
    %v225 = vadd.f32 %v147, %v224
    %226 = vdwg.mxu0
    %v227 = vld [vmem:[#allocation8] sm:$0xff]
    %v228 = vld [vmem:[#allocation8 + $0x8] sm:$0xff]
    %v229 = vld [vmem:[#allocation8 + $0x10] sm:$0xff]
    %v230 = vld [vmem:[#allocation8 + $0x18] sm:$0xff]
    %v231 = vld [vmem:[#allocation8 + $0x20] sm:$0xff]
    %v232 = vld [vmem:[#allocation8 + $0x28] sm:$0xff]
    %v233 = vld [vmem:[#allocation8 + $0x30] sm:$0xff]
    %v234 = vld [vmem:[#allocation8 + $0x38] sm:$0xff]
    %v235 = vld [vmem:[#allocation9] sm:$0xff]
    %v236 = vld [vmem:[#allocation9 + $0x8] sm:$0xff]
    %v237 = vld [vmem:[#allocation9 + $0x10] sm:$0xff]
    %v238 = vld [vmem:[#allocation9 + $0x18] sm:$0xff]
    %v239 = vld [vmem:[#allocation9 + $0x20] sm:$0xff]
    %v240 = vld [vmem:[#allocation9 + $0x28] sm:$0xff]
    %v241 = vld [vmem:[#allocation9 + $0x30] sm:$0xff]
    %v242 = vld [vmem:[#allocation9 + $0x38] sm:$0xff]
    %v243 = vld [vmem:[#allocation11] sm:$0xff]
    %v244 = vld [vmem:[#allocation11 + $0x8] sm:$0xff]
    %v245 = vld [vmem:[#allocation11 + $0x10] sm:$0xff]
    %v246 = vld [vmem:[#allocation11 + $0x18] sm:$0xff]
    %v247 = vld [vmem:[#allocation11 + $0x20] sm:$0xff]
    %v248 = vld [vmem:[#allocation11 + $0x28] sm:$0xff]
    %v249 = vld [vmem:[#allocation11 + $0x30] sm:$0xff]
    %v250 = vld [vmem:[#allocation11 + $0x38] sm:$0xff]
    %v251 = vld [vmem:[%s6] sm:$0x3]
    %v252 = vld [vmem:[%s7] sm:$0x1]
    %v261 = vunpack.c.l.b16 %v227
    %v262 = vunpack.c.h.b16 %v227
    %v263 = vunpack.c.l.b16 %v228
    %v264 = vunpack.c.h.b16 %v228
    %v265 = vunpack.c.l.b16 %v229
    %v266 = vunpack.c.h.b16 %v229
    %v267 = vunpack.c.l.b16 %v230
    %v268 = vunpack.c.h.b16 %v230
    %v269 = vunpack.c.l.b16 %v231
    %v270 = vunpack.c.h.b16 %v231
    %v271 = vunpack.c.l.b16 %v232
    %v272 = vunpack.c.h.b16 %v232
    %v273 = vunpack.c.l.b16 %v233
    %v274 = vunpack.c.h.b16 %v233
    %v275 = vunpack.c.l.b16 %v234
    %v276 = vunpack.c.h.b16 %v234
    %v277 = vpack.c.b16 %v263, %v261
    %v278 = vpack.c.b16 %v264, %v262
    %v279 = vpack.c.b16 %v267, %v265
    %v280 = vpack.c.b16 %v268, %v266
    %v281 = vpack.c.b16 %v271, %v269
    %v282 = vpack.c.b16 %v272, %v270
    %v283 = vpack.c.b16 %v275, %v273
    %v284 = vpack.c.b16 %v276, %v274
    %vm293 = vcmask 523264
    %v295 = vsel %vm293, 0, 0
    %297 = vmatprep.subr.bf16.mxu0 %v278
    %298 = vmatpush1.bf16.msra.mxu0 %v277
    %299 = vmatprep.subr.bf16.mxu0 %v280
    %300 = vmatpush1.bf16.msra.mxu0 %v279
    %301 = vmatprep.subr.bf16.mxu0 %v282
    %302 = vmatpush1.bf16.msra.mxu0 %v281
    %303 = vmatprep.subr.bf16.mxu0 %v284
    %304 = vmatpush1.bf16.msra.mxu0 %v283
    %305 = vmatprep.subr.bf16.mxu0 0
    %306 = vmatpush1.bf16.msra.mxu0 0
    %307 = vmatprep.subr.bf16.mxu0 0
    %308 = vmatpush1.bf16.msra.mxu0 0
    %309 = vmatprep.subr.bf16.mxu0 0
    %310 = vmatpush1.bf16.msra.mxu0 0
    %311 = vmatprep.subr.bf16.mxu0 0
    %312 = vmatpush1.bf16.msra.mxu0 0
    %313 = vmatprep.subr.bf16.mxu0 0
    %314 = vmatpush1.bf16.msra.mxu0 0
    %315 = vmatprep.subr.bf16.mxu0 0
    %316 = vmatpush1.bf16.msra.mxu0 0
    %317 = vmatprep.subr.bf16.mxu0 0
    %318 = vmatpush1.bf16.msra.mxu0 0
    %319 = vmatprep.subr.bf16.mxu0 0
    %320 = vmatpush1.bf16.msra.mxu0 0
    %321 = vmatprep.subr.bf16.mxu0 0
    %322 = vmatpush1.bf16.msra.mxu0 0
    %323 = vmatprep.subr.bf16.mxu0 0
    %324 = vmatpush1.bf16.msra.mxu0 0
    %325 = vmatprep.subr.bf16.mxu0 0
    %326 = vmatpush1.bf16.msra.mxu0 0
    %327 = vmatprep.subr.bf16.mxu0 0
    %328 = vmatpush1.bf16.msra.mxu0 0
    %329 = vmatprep.mubr.bf16.mxu0 0
    %330 = vmatmul.mubr.bf16.gmra.mrb[0].mxu0 %v295
    %v331 = vpop.f32.mrb[0].mxu0
    %v332 = vadd.f32 0.0, %v331
    %v333 = vpop.f32.mrb[0].mxu0
    %v334 = vadd.f32 0.0, %v333
    %v335 = vpop.f32.mrb[0].mxu0
    %v336 = vpop.f32.mrb[0].mxu0
    %337 = vdwg.mxu0
    %v338 = vadd.f32 %v217, %v332
    %v339 = vadd.f32 %v219, %v334
    %v340 = vmul.f32 %v338, 0.5
    %v341 = vtanh.pop %v340
    %v342 = vadd.f32 %v341, 1.0
    %v343 = vmul.f32 %v342, 0.5
    %v344 = vtanh.pop %v339
    %v345 = vmul.f32 %v339, 0.5
    %v346 = vtanh.pop %v345
    %v347 = vadd.f32 %v346, 1.0
    %v348 = vmul.f32 %v347, 0.5
    %v349 = vmul.f32 %v343, 0.0
    %v350 = vmul.f32 %v343, %v344
    %352 = vrot.lane.b32.xlu0 %v350, 64
    %v353 = vpop.permute.xlu0 %352
    %v355 = vadd.f32 %v349, %v353
    %v356 = vtanh.pop %v355
    %v357 = vmul.f32 %v348, %v356
    %v358 = vpack.c.bf16 %v357, %v357
    %v367 = vunpack.c.l.b16 %v243
    %v368 = vunpack.c.h.b16 %v243
    %v369 = vunpack.c.l.b16 %v244
    %v370 = vunpack.c.h.b16 %v244
    %v371 = vunpack.c.l.b16 %v245
    %v372 = vunpack.c.h.b16 %v245
    %v373 = vunpack.c.l.b16 %v246
    %v374 = vunpack.c.h.b16 %v246
    %v375 = vunpack.c.l.b16 %v247
    %v376 = vunpack.c.h.b16 %v247
    %v377 = vunpack.c.l.b16 %v248
    %v378 = vunpack.c.h.b16 %v248
    %v379 = vunpack.c.l.b16 %v249
    %v380 = vunpack.c.h.b16 %v249
    %v381 = vunpack.c.l.b16 %v250
    %v382 = vunpack.c.h.b16 %v250
    %v383 = vpack.c.b16 %v369, %v367
    %v384 = vpack.c.b16 %v370, %v368
    %v385 = vpack.c.b16 %v373, %v371
    %v386 = vpack.c.b16 %v374, %v372
    %v387 = vpack.c.b16 %v377, %v375
    %v388 = vpack.c.b16 %v378, %v376
    %v389 = vpack.c.b16 %v381, %v379
    %v390 = vpack.c.b16 %v382, %v380
    %399 = vmatprep.subr.bf16.mxu0 %v384
    %400 = vmatpush1.bf16.msra.mxu0 %v383
    %401 = vmatprep.subr.bf16.mxu0 %v386
    %402 = vmatpush1.bf16.msra.mxu0 %v385
    %403 = vmatprep.subr.bf16.mxu0 %v388
    %404 = vmatpush1.bf16.msra.mxu0 %v387
    %405 = vmatprep.subr.bf16.mxu0 %v390
    %406 = vmatpush1.bf16.msra.mxu0 %v389
    %407 = vmatprep.subr.bf16.mxu0 0
    %408 = vmatpush1.bf16.msra.mxu0 0
    %409 = vmatprep.subr.bf16.mxu0 0
    %410 = vmatpush1.bf16.msra.mxu0 0
    %411 = vmatprep.subr.bf16.mxu0 0
    %412 = vmatpush1.bf16.msra.mxu0 0
    %413 = vmatprep.subr.bf16.mxu0 0
    %414 = vmatpush1.bf16.msra.mxu0 0
    %415 = vmatprep.subr.bf16.mxu0 0
    %416 = vmatpush1.bf16.msra.mxu0 0
    %417 = vmatprep.subr.bf16.mxu0 0
    %418 = vmatpush1.bf16.msra.mxu0 0
    %419 = vmatprep.subr.bf16.mxu0 0
    %420 = vmatpush1.bf16.msra.mxu0 0
    %421 = vmatprep.subr.bf16.mxu0 0
    %422 = vmatpush1.bf16.msra.mxu0 0
    %423 = vmatprep.subr.bf16.mxu0 0
    %424 = vmatpush1.bf16.msra.mxu0 0
    %425 = vmatprep.subr.bf16.mxu0 0
    %426 = vmatpush1.bf16.msra.mxu0 0
    %427 = vmatprep.subr.bf16.mxu0 0
    %428 = vmatpush1.bf16.msra.mxu0 0
    %429 = vmatprep.subr.bf16.mxu0 0
    %430 = vmatpush1.bf16.msra.mxu0 0
    %431 = vmatprep.mubr.bf16.mxu0 0
    %432 = vmatmul.mubr.bf16.gmra.mrb[0].mxu0 %v295
    %v433 = vpop.f32.mrb[0].mxu0
    %v434 = vadd.f32 0.0, %v433
    %v435 = vpop.f32.mrb[0].mxu0
    %v436 = vadd.f32 0.0, %v435
    %v437 = vpop.f32.mrb[0].mxu0
    %v438 = vpop.f32.mrb[0].mxu0
    %439 = vdwg.mxu0
    %441 = vrot.lane.b32.xlu0 %v358, 64
    %v442 = vpop.permute.xlu0 %441
    %v451 = vunpack.c.l.b16 %v235
    %v452 = vunpack.c.h.b16 %v235
    %v453 = vunpack.c.l.b16 %v236
    %v454 = vunpack.c.h.b16 %v236
    %v455 = vunpack.c.l.b16 %v237
    %v456 = vunpack.c.h.b16 %v237
    %v457 = vunpack.c.l.b16 %v238
    %v458 = vunpack.c.h.b16 %v238
    %v459 = vunpack.c.l.b16 %v239
    %v460 = vunpack.c.h.b16 %v239
    %v461 = vunpack.c.l.b16 %v240
    %v462 = vunpack.c.h.b16 %v240
    %v463 = vunpack.c.l.b16 %v241
    %v464 = vunpack.c.h.b16 %v241
    %v465 = vunpack.c.l.b16 %v242
    %v466 = vunpack.c.h.b16 %v242
    %v467 = vpack.c.b16 %v453, %v451
    %v468 = vpack.c.b16 %v454, %v452
    %v469 = vpack.c.b16 %v457, %v455
    %v470 = vpack.c.b16 %v458, %v456
    %v471 = vpack.c.b16 %v461, %v459
    %v472 = vpack.c.b16 %v462, %v460
    %v473 = vpack.c.b16 %v465, %v463
    %v474 = vpack.c.b16 %v466, %v464
    %v484 = vsel %vm293, %v442, 0
    %486 = vmatprep.subr.bf16.mxu0 %v468
    %487 = vmatpush1.bf16.msra.mxu0 %v467
    %488 = vmatprep.subr.bf16.mxu0 %v470
    %489 = vmatpush1.bf16.msra.mxu0 %v469
    %490 = vmatprep.subr.bf16.mxu0 %v472
    %491 = vmatpush1.bf16.msra.mxu0 %v471
    %492 = vmatprep.subr.bf16.mxu0 %v474
    %493 = vmatpush1.bf16.msra.mxu0 %v473
    %494 = vmatprep.subr.bf16.mxu0 0
    %495 = vmatpush1.bf16.msra.mxu0 0
    %496 = vmatprep.subr.bf16.mxu0 0
    %497 = vmatpush1.bf16.msra.mxu0 0
    %498 = vmatprep.subr.bf16.mxu0 0
    %499 = vmatpush1.bf16.msra.mxu0 0
    %500 = vmatprep.subr.bf16.mxu0 0
    %501 = vmatpush1.bf16.msra.mxu0 0
    %502 = vmatprep.subr.bf16.mxu0 0
    %503 = vmatpush1.bf16.msra.mxu0 0
    %504 = vmatprep.subr.bf16.mxu0 0
    %505 = vmatpush1.bf16.msra.mxu0 0
    %506 = vmatprep.subr.bf16.mxu0 0
    %507 = vmatpush1.bf16.msra.mxu0 0
    %508 = vmatprep.subr.bf16.mxu0 0
    %509 = vmatpush1.bf16.msra.mxu0 0
    %510 = vmatprep.subr.bf16.mxu0 0
    %511 = vmatpush1.bf16.msra.mxu0 0
    %512 = vmatprep.subr.bf16.mxu0 0
    %513 = vmatpush1.bf16.msra.mxu0 0
    %514 = vmatprep.subr.bf16.mxu0 0
    %515 = vmatpush1.bf16.msra.mxu0 0
    %516 = vmatprep.subr.bf16.mxu0 0
    %517 = vmatpush1.bf16.msra.mxu0 0
    %518 = vmatprep.mubr.bf16.mxu0 0
    %519 = vmatmul.mubr.bf16.gmra.mrb[0].mxu0 %v484
    %v520 = vpop.f32.mrb[0].mxu0
    %v521 = vadd.f32 %v434, %v520
    %v522 = vpop.f32.mrb[0].mxu0
    %v523 = vadd.f32 %v436, %v522
    %v524 = vpop.f32.mrb[0].mxu0
    %v525 = vpop.f32.mrb[0].mxu0
    %526 = vdwg.mxu0
    %v528 = vlaneseq
    %v529 = vshrl.u32 %v528, 7
    %v530 = vsub.s32 0, %v529
    %v531 = vrot.slane %v251, %v530
    %v532 = vlaneseq
    %v533 = vshrl.u32 %v532, 7
    %v534 = vsub.s32 1, %v533
    %v535 = vrot.slane %v251, %v534
    %v538 = vadd.f32 %v521, %v531
    %v539 = vadd.f32 %v523, %v535
    %v540 = vmul.f32 %v538, 0.5
    %v541 = vtanh.pop %v540
    %v542 = vadd.f32 %v541, 1.0
    %v543 = vmul.f32 %v542, 0.5
    %v544 = vtanh.pop %v539
    %v545 = vmul.f32 %v539, 0.5
    %v546 = vtanh.pop %v545
    %v547 = vadd.f32 %v546, 1.0
    %v548 = vmul.f32 %v547, 0.5
    %v549 = vmul.f32 %v543, 0.0
    %v550 = vmul.f32 %v543, %v544
    %552 = vrot.lane.b32.xlu0 %v550, 64
    %v553 = vpop.permute.xlu0 %552
    %v555 = vadd.f32 %v549, %v553
    %v556 = vtanh.pop %v555
    %v557 = vmul.f32 %v548, %v556
    %558 = vmatprep.subr.bf16.mxu0 %v278
    %559 = vmatpush1.bf16.msra.mxu0 %v277
    %560 = vmatprep.subr.bf16.mxu0 %v280
    %561 = vmatpush1.bf16.msra.mxu0 %v279
    %562 = vmatprep.subr.bf16.mxu0 %v282
    %563 = vmatpush1.bf16.msra.mxu0 %v281
    %564 = vmatprep.subr.bf16.mxu0 %v284
    %565 = vmatpush1.bf16.msra.mxu0 %v283
    %566 = vmatprep.subr.bf16.mxu0 0
    %567 = vmatpush1.bf16.msra.mxu0 0
    %568 = vmatprep.subr.bf16.mxu0 0
    %569 = vmatpush1.bf16.msra.mxu0 0
    %570 = vmatprep.subr.bf16.mxu0 0
    %571 = vmatpush1.bf16.msra.mxu0 0
    %572 = vmatprep.subr.bf16.mxu0 0
    %573 = vmatpush1.bf16.msra.mxu0 0
    %574 = vmatprep.subr.bf16.mxu0 0
    %575 = vmatpush1.bf16.msra.mxu0 0
    %576 = vmatprep.subr.bf16.mxu0 0
    %577 = vmatpush1.bf16.msra.mxu0 0
    %578 = vmatprep.subr.bf16.mxu0 0
    %579 = vmatpush1.bf16.msra.mxu0 0
    %580 = vmatprep.subr.bf16.mxu0 0
    %581 = vmatpush1.bf16.msra.mxu0 0
    %582 = vmatprep.subr.bf16.mxu0 0
    %583 = vmatpush1.bf16.msra.mxu0 0
    %584 = vmatprep.subr.bf16.mxu0 0
    %585 = vmatpush1.bf16.msra.mxu0 0
    %586 = vmatprep.subr.bf16.mxu0 0
    %587 = vmatpush1.bf16.msra.mxu0 0
    %588 = vmatprep.subr.bf16.mxu0 0
    %589 = vmatpush1.bf16.msra.mxu0 0
    %590 = vmatprep.mubr.bf16.mxu0 0
    %591 = vmatmul.mubr.bf16.gmra.mrb[0].mxu0 %v484
    %v592 = vpop.f32.mrb[0].mxu0
    %v593 = vadd.f32 0.0, %v592
    %v594 = vpop.f32.mrb[0].mxu0
    %v595 = vadd.f32 0.0, %v594
    %v596 = vpop.f32.mrb[0].mxu0
    %v597 = vpop.f32.mrb[0].mxu0
    %598 = vdwg.mxu0
    %v601 = vrot.slane %v593, 6
    %v602 = vrot.slane %v595, 6
    %v605 = vadd.f32 %v217, %v601
    %v606 = vadd.f32 %v219, %v602
    %v607 = vmul.f32 %v605, 0.5
    %v608 = vtanh.pop %v607
    %v609 = vadd.f32 %v608, 1.0
    %v610 = vmul.f32 %v609, 0.5
    %v611 = vtanh.pop %v606
    %v612 = vmul.f32 %v606, 0.5
    %v613 = vtanh.pop %v612
    %v614 = vadd.f32 %v613, 1.0
    %v615 = vmul.f32 %v614, 0.5
    %v617 = vrot.slane %v355, 6
    %v619 = vmul.f32 %v610, %v617
    %v620 = vmul.f32 %v610, %v611
    %622 = vrot.lane.b32.xlu0 %v620, 64
    %v623 = vpop.permute.xlu0 %622
    %v625 = vadd.f32 %v619, %v623
    %v626 = vtanh.pop %v625
    %v627 = vmul.f32 %v615, %v626
    %v628 = vpack.c.bf16 %v627, %v627
    %v629 = vpack.c.bf16 %v557, %v557
    %631 = vrot.lane.b32.xlu0 %v629, 64
    %v632 = vpop.permute.xlu0 %631
    %v634 = vsel %vm293, %v632, 0
    %636 = vmatprep.subr.bf16.mxu0 %v384
    %637 = vmatpush1.bf16.msra.mxu0 %v383
    %638 = vmatprep.subr.bf16.mxu0 %v386
    %639 = vmatpush1.bf16.msra.mxu0 %v385
    %640 = vmatprep.subr.bf16.mxu0 %v388
    %641 = vmatpush1.bf16.msra.mxu0 %v387
    %642 = vmatprep.subr.bf16.mxu0 %v390
    %643 = vmatpush1.bf16.msra.mxu0 %v389
    %644 = vmatprep.subr.bf16.mxu0 0
    %645 = vmatpush1.bf16.msra.mxu0 0
    %646 = vmatprep.subr.bf16.mxu0 0
    %647 = vmatpush1.bf16.msra.mxu0 0
    %648 = vmatprep.subr.bf16.mxu0 0
    %649 = vmatpush1.bf16.msra.mxu0 0
    %650 = vmatprep.subr.bf16.mxu0 0
    %651 = vmatpush1.bf16.msra.mxu0 0
    %652 = vmatprep.subr.bf16.mxu0 0
    %653 = vmatpush1.bf16.msra.mxu0 0
    %654 = vmatprep.subr.bf16.mxu0 0
    %655 = vmatpush1.bf16.msra.mxu0 0
    %656 = vmatprep.subr.bf16.mxu0 0
    %657 = vmatpush1.bf16.msra.mxu0 0
    %658 = vmatprep.subr.bf16.mxu0 0
    %659 = vmatpush1.bf16.msra.mxu0 0
    %660 = vmatprep.subr.bf16.mxu0 0
    %661 = vmatpush1.bf16.msra.mxu0 0
    %662 = vmatprep.subr.bf16.mxu0 0
    %663 = vmatpush1.bf16.msra.mxu0 0
    %664 = vmatprep.subr.bf16.mxu0 0
    %665 = vmatpush1.bf16.msra.mxu0 0
    %666 = vmatprep.subr.bf16.mxu0 0
    %667 = vmatpush1.bf16.msra.mxu0 0
    %668 = vmatprep.mubr.bf16.mxu0 0
    %669 = vmatmul.mubr.bf16.gmra.mrb[0].mxu0 %v634
    %v670 = vpop.f32.mrb[0].mxu0
    %v671 = vadd.f32 0.0, %v670
    %v672 = vpop.f32.mrb[0].mxu0
    %v673 = vadd.f32 0.0, %v672
    %v674 = vpop.f32.mrb[0].mxu0
    %v675 = vpop.f32.mrb[0].mxu0
    %676 = vdwg.mxu0
    %v678 = vrot.slane %v628, 1
    %679 = vrot.lane.b32.xlu0 %v678, 64
    %v680 = vpop.permute.xlu0 %679
    %v682 = vsel %vm293, %v680, 0
    %684 = vmatprep.subr.bf16.mxu0 %v468
    %685 = vmatpush1.bf16.msra.mxu0 %v467
    %686 = vmatprep.subr.bf16.mxu0 %v470
    %687 = vmatpush1.bf16.msra.mxu0 %v469
    %688 = vmatprep.subr.bf16.mxu0 %v472
    %689 = vmatpush1.bf16.msra.mxu0 %v471
    %690 = vmatprep.subr.bf16.mxu0 %v474
    %691 = vmatpush1.bf16.msra.mxu0 %v473
    %692 = vmatprep.subr.bf16.mxu0 0
    %693 = vmatpush1.bf16.msra.mxu0 0
    %694 = vmatprep.subr.bf16.mxu0 0
    %695 = vmatpush1.bf16.msra.mxu0 0
    %696 = vmatprep.subr.bf16.mxu0 0
    %697 = vmatpush1.bf16.msra.mxu0 0
    %698 = vmatprep.subr.bf16.mxu0 0
    %699 = vmatpush1.bf16.msra.mxu0 0
    %700 = vmatprep.subr.bf16.mxu0 0
    %701 = vmatpush1.bf16.msra.mxu0 0
    %702 = vmatprep.subr.bf16.mxu0 0
    %703 = vmatpush1.bf16.msra.mxu0 0
    %704 = vmatprep.subr.bf16.mxu0 0
    %705 = vmatpush1.bf16.msra.mxu0 0
    %706 = vmatprep.subr.bf16.mxu0 0
    %707 = vmatpush1.bf16.msra.mxu0 0
    %708 = vmatprep.subr.bf16.mxu0 0
    %709 = vmatpush1.bf16.msra.mxu0 0
    %710 = vmatprep.subr.bf16.mxu0 0
    %711 = vmatpush1.bf16.msra.mxu0 0
    %712 = vmatprep.subr.bf16.mxu0 0
    %713 = vmatpush1.bf16.msra.mxu0 0
    %714 = vmatprep.subr.bf16.mxu0 0
    %715 = vmatpush1.bf16.msra.mxu0 0
    %716 = vmatprep.mubr.bf16.mxu0 0
    %717 = vmatmul.mubr.bf16.gmra.mrb[0].mxu0 %v682
    %v718 = vpop.f32.mrb[0].mxu0
    %v719 = vadd.f32 %v671, %v718
    %v720 = vpop.f32.mrb[0].mxu0
    %v721 = vadd.f32 %v673, %v720
    %v722 = vpop.f32.mrb[0].mxu0
    %v723 = vpop.f32.mrb[0].mxu0
    %724 = vdwg.mxu0
    %v725 = vadd.f32 %v719, %v531
    %v726 = vadd.f32 %v721, %v535
    %v727 = vmul.f32 %v725, 0.5
    %v728 = vtanh.pop %v727
    %v729 = vadd.f32 %v728, 1.0
    %v730 = vmul.f32 %v729, 0.5
    %v731 = vtanh.pop %v726
    %v732 = vmul.f32 %v726, 0.5
    %v733 = vtanh.pop %v732
    %v734 = vadd.f32 %v733, 1.0
    %v735 = vmul.f32 %v734, 0.5
    %v736 = vmul.f32 %v730, %v555
    %v737 = vmul.f32 %v730, %v731
    %739 = vrot.lane.b32.xlu0 %v737, 64
    %v740 = vpop.permute.xlu0 %739
    %v742 = vadd.f32 %v736, %v740
    %v743 = vtanh.pop %v742
    %v744 = vmul.f32 %v735, %v743
    %745 = vmatprep.subr.bf16.mxu0 %v278
    %746 = vmatpush1.bf16.msra.mxu0 %v277
    %747 = vmatprep.subr.bf16.mxu0 %v280
    %748 = vmatpush1.bf16.msra.mxu0 %v279
    %749 = vmatprep.subr.bf16.mxu0 %v282
    %750 = vmatpush1.bf16.msra.mxu0 %v281
    %751 = vmatprep.subr.bf16.mxu0 %v284
    %752 = vmatpush1.bf16.msra.mxu0 %v283
    %753 = vmatprep.subr.bf16.mxu0 0
    %754 = vmatpush1.bf16.msra.mxu0 0
    %755 = vmatprep.subr.bf16.mxu0 0
    %756 = vmatpush1.bf16.msra.mxu0 0
    %757 = vmatprep.subr.bf16.mxu0 0
    %758 = vmatpush1.bf16.msra.mxu0 0
    %759 = vmatprep.subr.bf16.mxu0 0
    %760 = vmatpush1.bf16.msra.mxu0 0
    %761 = vmatprep.subr.bf16.mxu0 0
    %762 = vmatpush1.bf16.msra.mxu0 0
    %763 = vmatprep.subr.bf16.mxu0 0
    %764 = vmatpush1.bf16.msra.mxu0 0
    %765 = vmatprep.subr.bf16.mxu0 0
    %766 = vmatpush1.bf16.msra.mxu0 0
    %767 = vmatprep.subr.bf16.mxu0 0
    %768 = vmatpush1.bf16.msra.mxu0 0
    %769 = vmatprep.subr.bf16.mxu0 0
    %770 = vmatpush1.bf16.msra.mxu0 0
    %771 = vmatprep.subr.bf16.mxu0 0
    %772 = vmatpush1.bf16.msra.mxu0 0
    %773 = vmatprep.subr.bf16.mxu0 0
    %774 = vmatpush1.bf16.msra.mxu0 0
    %775 = vmatprep.subr.bf16.mxu0 0
    %776 = vmatpush1.bf16.msra.mxu0 0
    %777 = vmatprep.mubr.bf16.mxu0 0
    %778 = vmatmul.mubr.bf16.gmra.mrb[0].mxu0 %v682
    %v779 = vpop.f32.mrb[0].mxu0
    %v780 = vadd.f32 0.0, %v779
    %v781 = vpop.f32.mrb[0].mxu0
    %v782 = vadd.f32 0.0, %v781
    %v783 = vpop.f32.mrb[0].mxu0
    %v784 = vpop.f32.mrb[0].mxu0
    %785 = vdwg.mxu0
    %v788 = vrot.slane %v780, 4
    %v789 = vrot.slane %v782, 4
    %v792 = vadd.f32 %v217, %v788
    %v793 = vadd.f32 %v219, %v789
    %v794 = vmul.f32 %v792, 0.5
    %v795 = vtanh.pop %v794
    %v796 = vadd.f32 %v795, 1.0
    %v797 = vmul.f32 %v796, 0.5
    %v798 = vtanh.pop %v793
    %v799 = vmul.f32 %v793, 0.5
    %v800 = vtanh.pop %v799
    %v801 = vadd.f32 %v800, 1.0
    %v802 = vmul.f32 %v801, 0.5
    %v804 = vrot.slane %v625, 6
    %v806 = vmul.f32 %v797, %v804
    %v807 = vmul.f32 %v797, %v798
    %809 = vrot.lane.b32.xlu0 %v807, 64
    %v810 = vpop.permute.xlu0 %809
    %v812 = vadd.f32 %v806, %v810
    %v813 = vtanh.pop %v812
    %v814 = vmul.f32 %v802, %v813
    %v815 = vpack.c.bf16 %v814, %v814
    %v816 = vpack.c.bf16 %v744, %v744
    %818 = vrot.lane.b32.xlu0 %v816, 64
    %v819 = vpop.permute.xlu0 %818
    %v821 = vsel %vm293, %v819, 0
    %823 = vmatprep.subr.bf16.mxu0 %v384
    %824 = vmatpush1.bf16.msra.mxu0 %v383
    %825 = vmatprep.subr.bf16.mxu0 %v386
    %826 = vmatpush1.bf16.msra.mxu0 %v385
    %827 = vmatprep.subr.bf16.mxu0 %v388
    %828 = vmatpush1.bf16.msra.mxu0 %v387
    %829 = vmatprep.subr.bf16.mxu0 %v390
    %830 = vmatpush1.bf16.msra.mxu0 %v389
    %831 = vmatprep.subr.bf16.mxu0 0
    %832 = vmatpush1.bf16.msra.mxu0 0
    %833 = vmatprep.subr.bf16.mxu0 0
    %834 = vmatpush1.bf16.msra.mxu0 0
    %835 = vmatprep.subr.bf16.mxu0 0
    %836 = vmatpush1.bf16.msra.mxu0 0
    %837 = vmatprep.subr.bf16.mxu0 0
    %838 = vmatpush1.bf16.msra.mxu0 0
    %839 = vmatprep.subr.bf16.mxu0 0
    %840 = vmatpush1.bf16.msra.mxu0 0
    %841 = vmatprep.subr.bf16.mxu0 0
    %842 = vmatpush1.bf16.msra.mxu0 0
    %843 = vmatprep.subr.bf16.mxu0 0
    %844 = vmatpush1.bf16.msra.mxu0 0
    %845 = vmatprep.subr.bf16.mxu0 0
    %846 = vmatpush1.bf16.msra.mxu0 0
    %847 = vmatprep.subr.bf16.mxu0 0
    %848 = vmatpush1.bf16.msra.mxu0 0
    %849 = vmatprep.subr.bf16.mxu0 0
    %850 = vmatpush1.bf16.msra.mxu0 0
    %851 = vmatprep.subr.bf16.mxu0 0
    %852 = vmatpush1.bf16.msra.mxu0 0
    %853 = vmatprep.subr.bf16.mxu0 0
    %854 = vmatpush1.bf16.msra.mxu0 0
    %855 = vmatprep.mubr.bf16.mxu0 0
    %856 = vmatmul.mubr.bf16.gmra.mrb[0].mxu0 %v821
    %v857 = vpop.f32.mrb[0].mxu0
    %v858 = vadd.f32 0.0, %v857
    %v859 = vpop.f32.mrb[0].mxu0
    %v860 = vadd.f32 0.0, %v859
    %v861 = vpop.f32.mrb[0].mxu0
    %v862 = vpop.f32.mrb[0].mxu0
    %863 = vdwg.mxu0
    %v865 = vrot.slane %v815, 2
    %866 = vrot.lane.b32.xlu0 %v865, 64
    %v867 = vpop.permute.xlu0 %866
    %v869 = vsel %vm293, %v867, 0
    %871 = vmatprep.subr.bf16.mxu0 %v468
    %872 = vmatpush1.bf16.msra.mxu0 %v467
    %873 = vmatprep.subr.bf16.mxu0 %v470
    %874 = vmatpush1.bf16.msra.mxu0 %v469
    %875 = vmatprep.subr.bf16.mxu0 %v472
    %876 = vmatpush1.bf16.msra.mxu0 %v471
    %877 = vmatprep.subr.bf16.mxu0 %v474
    %878 = vmatpush1.bf16.msra.mxu0 %v473
    %879 = vmatprep.subr.bf16.mxu0 0
    %880 = vmatpush1.bf16.msra.mxu0 0
    %881 = vmatprep.subr.bf16.mxu0 0
    %882 = vmatpush1.bf16.msra.mxu0 0
    %883 = vmatprep.subr.bf16.mxu0 0
    %884 = vmatpush1.bf16.msra.mxu0 0
    %885 = vmatprep.subr.bf16.mxu0 0
    %886 = vmatpush1.bf16.msra.mxu0 0
    %887 = vmatprep.subr.bf16.mxu0 0
    %888 = vmatpush1.bf16.msra.mxu0 0
    %889 = vmatprep.subr.bf16.mxu0 0
    %890 = vmatpush1.bf16.msra.mxu0 0
    %891 = vmatprep.subr.bf16.mxu0 0
    %892 = vmatpush1.bf16.msra.mxu0 0
    %893 = vmatprep.subr.bf16.mxu0 0
    %894 = vmatpush1.bf16.msra.mxu0 0
    %895 = vmatprep.subr.bf16.mxu0 0
    %896 = vmatpush1.bf16.msra.mxu0 0
    %897 = vmatprep.subr.bf16.mxu0 0
    %898 = vmatpush1.bf16.msra.mxu0 0
    %899 = vmatprep.subr.bf16.mxu0 0
    %900 = vmatpush1.bf16.msra.mxu0 0
    %901 = vmatprep.subr.bf16.mxu0 0
    %902 = vmatpush1.bf16.msra.mxu0 0
    %903 = vmatprep.mubr.bf16.mxu0 0
    %904 = vmatmul.mubr.bf16.gmra.mrb[0].mxu0 %v869
    %v905 = vpop.f32.mrb[0].mxu0
    %v906 = vadd.f32 %v858, %v905
    %v907 = vpop.f32.mrb[0].mxu0
    %v908 = vadd.f32 %v860, %v907
    %v909 = vpop.f32.mrb[0].mxu0
    %v910 = vpop.f32.mrb[0].mxu0
    %911 = vdwg.mxu0
    %v912 = vadd.f32 %v906, %v531
    %v913 = vadd.f32 %v908, %v535
    %v914 = vmul.f32 %v912, 0.5
    %v915 = vtanh.pop %v914
    %v916 = vadd.f32 %v915, 1.0
    %v917 = vmul.f32 %v916, 0.5
    %v918 = vtanh.pop %v913
    %v919 = vmul.f32 %v913, 0.5
    %v920 = vtanh.pop %v919
    %v921 = vadd.f32 %v920, 1.0
    %v922 = vmul.f32 %v921, 0.5
    %v923 = vmul.f32 %v917, %v742
    %v924 = vmul.f32 %v917, %v918
    %926 = vrot.lane.b32.xlu0 %v924, 64
    %v927 = vpop.permute.xlu0 %926
    %v929 = vadd.f32 %v923, %v927
    %v930 = vtanh.pop %v929
    %v931 = vmul.f32 %v922, %v930
    %932 = vmatprep.subr.bf16.mxu0 %v278
    %933 = vmatpush1.bf16.msra.mxu0 %v277
    %934 = vmatprep.subr.bf16.mxu0 %v280
    %935 = vmatpush1.bf16.msra.mxu0 %v279
    %936 = vmatprep.subr.bf16.mxu0 %v282
    %937 = vmatpush1.bf16.msra.mxu0 %v281
    %938 = vmatprep.subr.bf16.mxu0 %v284
    %939 = vmatpush1.bf16.msra.mxu0 %v283
    %940 = vmatprep.subr.bf16.mxu0 0
    %941 = vmatpush1.bf16.msra.mxu0 0
    %942 = vmatprep.subr.bf16.mxu0 0
    %943 = vmatpush1.bf16.msra.mxu0 0
    %944 = vmatprep.subr.bf16.mxu0 0
    %945 = vmatpush1.bf16.msra.mxu0 0
    %946 = vmatprep.subr.bf16.mxu0 0
    %947 = vmatpush1.bf16.msra.mxu0 0
    %948 = vmatprep.subr.bf16.mxu0 0
    %949 = vmatpush1.bf16.msra.mxu0 0
    %950 = vmatprep.subr.bf16.mxu0 0
    %951 = vmatpush1.bf16.msra.mxu0 0
    %952 = vmatprep.subr.bf16.mxu0 0
    %953 = vmatpush1.bf16.msra.mxu0 0
    %954 = vmatprep.subr.bf16.mxu0 0
    %955 = vmatpush1.bf16.msra.mxu0 0
    %956 = vmatprep.subr.bf16.mxu0 0
    %957 = vmatpush1.bf16.msra.mxu0 0
    %958 = vmatprep.subr.bf16.mxu0 0
    %959 = vmatpush1.bf16.msra.mxu0 0
    %960 = vmatprep.subr.bf16.mxu0 0
    %961 = vmatpush1.bf16.msra.mxu0 0
    %962 = vmatprep.subr.bf16.mxu0 0
    %963 = vmatpush1.bf16.msra.mxu0 0
    %964 = vmatprep.mubr.bf16.mxu0 0
    %965 = vmatmul.mubr.bf16.gmra.mrb[0].mxu0 %v869
    %v966 = vpop.f32.mrb[0].mxu0
    %v967 = vadd.f32 0.0, %v966
    %v968 = vpop.f32.mrb[0].mxu0
    %v969 = vadd.f32 0.0, %v968
    %v970 = vpop.f32.mrb[0].mxu0
    %v971 = vpop.f32.mrb[0].mxu0
    %972 = vdwg.mxu0
    %v975 = vrot.slane %v967, 2
    %v976 = vrot.slane %v969, 2
    %v979 = vadd.f32 %v217, %v975
    %v980 = vadd.f32 %v219, %v976
    %v981 = vmul.f32 %v979, 0.5
    %v982 = vtanh.pop %v981
    %v983 = vadd.f32 %v982, 1.0
    %v984 = vmul.f32 %v983, 0.5
    %v985 = vtanh.pop %v980
    %v986 = vmul.f32 %v980, 0.5
    %v987 = vtanh.pop %v986
    %v988 = vadd.f32 %v987, 1.0
    %v989 = vmul.f32 %v988, 0.5
    %v991 = vrot.slane %v812, 6
    %v993 = vmul.f32 %v984, %v991
    %v994 = vmul.f32 %v984, %v985
    %996 = vrot.lane.b32.xlu0 %v994, 64
    %v997 = vpop.permute.xlu0 %996
    %v999 = vadd.f32 %v993, %v997
    %v1000 = vtanh.pop %v999
    %v1001 = vmul.f32 %v989, %v1000
    %v1002 = vpack.c.bf16 %v1001, %v1001
    %v1003 = vpack.c.bf16 %v931, %v931
    %1005 = vrot.lane.b32.xlu0 %v1003, 64
    %v1006 = vpop.permute.xlu0 %1005
    %v1008 = vsel %vm293, %v1006, 0
    %1010 = vmatprep.subr.bf16.mxu0 %v384
    %1011 = vmatpush1.bf16.msra.mxu0 %v383
    %1012 = vmatprep.subr.bf16.mxu0 %v386
    %1013 = vmatpush1.bf16.msra.mxu0 %v385
    %1014 = vmatprep.subr.bf16.mxu0 %v388
    %1015 = vmatpush1.bf16.msra.mxu0 %v387
    %1016 = vmatprep.subr.bf16.mxu0 %v390
    %1017 = vmatpush1.bf16.msra.mxu0 %v389
    %1018 = vmatprep.subr.bf16.mxu0 0
    %1019 = vmatpush1.bf16.msra.mxu0 0
    %1020 = vmatprep.subr.bf16.mxu0 0
    %1021 = vmatpush1.bf16.msra.mxu0 0
    %1022 = vmatprep.subr.bf16.mxu0 0
    %1023 = vmatpush1.bf16.msra.mxu0 0
    %1024 = vmatprep.subr.bf16.mxu0 0
    %1025 = vmatpush1.bf16.msra.mxu0 0
    %1026 = vmatprep.subr.bf16.mxu0 0
    %1027 = vmatpush1.bf16.msra.mxu0 0
    %1028 = vmatprep.subr.bf16.mxu0 0
    %1029 = vmatpush1.bf16.msra.mxu0 0
    %1030 = vmatprep.subr.bf16.mxu0 0
    %1031 = vmatpush1.bf16.msra.mxu0 0
    %1032 = vmatprep.subr.bf16.mxu0 0
    %1033 = vmatpush1.bf16.msra.mxu0 0
    %1034 = vmatprep.subr.bf16.mxu0 0
    %1035 = vmatpush1.bf16.msra.mxu0 0
    %1036 = vmatprep.subr.bf16.mxu0 0
    %1037 = vmatpush1.bf16.msra.mxu0 0
    %1038 = vmatprep.subr.bf16.mxu0 0
    %1039 = vmatpush1.bf16.msra.mxu0 0
    %1040 = vmatprep.subr.bf16.mxu0 0
    %1041 = vmatpush1.bf16.msra.mxu0 0
    %1042 = vmatprep.mubr.bf16.mxu0 0
    %1043 = vmatmul.mubr.bf16.gmra.mrb[0].mxu0 %v1008
    %v1044 = vpop.f32.mrb[0].mxu0
    %v1045 = vadd.f32 0.0, %v1044
    %v1046 = vpop.f32.mrb[0].mxu0
    %v1047 = vadd.f32 0.0, %v1046
    %v1048 = vpop.f32.mrb[0].mxu0
    %v1049 = vpop.f32.mrb[0].mxu0
    %1050 = vdwg.mxu0
    %v1052 = vrot.slane %v1002, 3
    %1053 = vrot.lane.b32.xlu0 %v1052, 64
    %v1054 = vpop.permute.xlu0 %1053
    %v1056 = vsel %vm293, %v1054, 0
    %1058 = vmatprep.subr.bf16.mxu0 %v468
    %1059 = vmatpush1.bf16.msra.mxu0 %v467
    %1060 = vmatprep.subr.bf16.mxu0 %v470
    %1061 = vmatpush1.bf16.msra.mxu0 %v469
    %1062 = vmatprep.subr.bf16.mxu0 %v472
    %1063 = vmatpush1.bf16.msra.mxu0 %v471
    %1064 = vmatprep.subr.bf16.mxu0 %v474
    %1065 = vmatpush1.bf16.msra.mxu0 %v473
    %1066 = vmatprep.subr.bf16.mxu0 0
    %1067 = vmatpush1.bf16.msra.mxu0 0
    %1068 = vmatprep.subr.bf16.mxu0 0
    %1069 = vmatpush1.bf16.msra.mxu0 0
    %1070 = vmatprep.subr.bf16.mxu0 0
    %1071 = vmatpush1.bf16.msra.mxu0 0
    %1072 = vmatprep.subr.bf16.mxu0 0
    %1073 = vmatpush1.bf16.msra.mxu0 0
    %1074 = vmatprep.subr.bf16.mxu0 0
    %1075 = vmatpush1.bf16.msra.mxu0 0
    %1076 = vmatprep.subr.bf16.mxu0 0
    %1077 = vmatpush1.bf16.msra.mxu0 0
    %1078 = vmatprep.subr.bf16.mxu0 0
    %1079 = vmatpush1.bf16.msra.mxu0 0
    %1080 = vmatprep.subr.bf16.mxu0 0
    %1081 = vmatpush1.bf16.msra.mxu0 0
    %1082 = vmatprep.subr.bf16.mxu0 0
    %1083 = vmatpush1.bf16.msra.mxu0 0
    %1084 = vmatprep.subr.bf16.mxu0 0
    %1085 = vmatpush1.bf16.msra.mxu0 0
    %1086 = vmatprep.subr.bf16.mxu0 0
    %1087 = vmatpush1.bf16.msra.mxu0 0
    %1088 = vmatprep.subr.bf16.mxu0 0
    %1089 = vmatpush1.bf16.msra.mxu0 0
    %1090 = vmatprep.mubr.bf16.mxu0 0
    %1091 = vmatmul.mubr.bf16.gmra.mrb[0].mxu0 %v1056
    %v1092 = vpop.f32.mrb[0].mxu0
    %v1093 = vadd.f32 %v1045, %v1092
    %v1094 = vpop.f32.mrb[0].mxu0
    %v1095 = vadd.f32 %v1047, %v1094
    %v1096 = vpop.f32.mrb[0].mxu0
    %v1097 = vpop.f32.mrb[0].mxu0
    %1098 = vdwg.mxu0
    %v1099 = vadd.f32 %v1093, %v531
    %v1100 = vadd.f32 %v1095, %v535
    %v1101 = vmul.f32 %v1099, 0.5
    %v1102 = vtanh.pop %v1101
    %v1103 = vadd.f32 %v1102, 1.0
    %v1104 = vmul.f32 %v1103, 0.5
    %v1105 = vtanh.pop %v1100
    %v1106 = vmul.f32 %v1100, 0.5
    %v1107 = vtanh.pop %v1106
    %v1108 = vadd.f32 %v1107, 1.0
    %v1109 = vmul.f32 %v1108, 0.5
    %v1110 = vmul.f32 %v1104, %v929
    %v1111 = vmul.f32 %v1104, %v1105
    %1113 = vrot.lane.b32.xlu0 %v1111, 64
    %v1114 = vpop.permute.xlu0 %1113
    %v1116 = vadd.f32 %v1110, %v1114
    %v1117 = vtanh.pop %v1116
    %v1118 = vmul.f32 %v1109, %v1117
    %1119 = vmatprep.subr.bf16.mxu0 %v278
    %1120 = vmatpush1.bf16.msra.mxu0 %v277
    %1121 = vmatprep.subr.bf16.mxu0 %v280
    %1122 = vmatpush1.bf16.msra.mxu0 %v279
    %1123 = vmatprep.subr.bf16.mxu0 %v282
    %1124 = vmatpush1.bf16.msra.mxu0 %v281
    %1125 = vmatprep.subr.bf16.mxu0 %v284
    %1126 = vmatpush1.bf16.msra.mxu0 %v283
    %1127 = vmatprep.subr.bf16.mxu0 0
    %1128 = vmatpush1.bf16.msra.mxu0 0
    %1129 = vmatprep.subr.bf16.mxu0 0
    %1130 = vmatpush1.bf16.msra.mxu0 0
    %1131 = vmatprep.subr.bf16.mxu0 0
    %1132 = vmatpush1.bf16.msra.mxu0 0
    %1133 = vmatprep.subr.bf16.mxu0 0
    %1134 = vmatpush1.bf16.msra.mxu0 0
    %1135 = vmatprep.subr.bf16.mxu0 0
    %1136 = vmatpush1.bf16.msra.mxu0 0
    %1137 = vmatprep.subr.bf16.mxu0 0
    %1138 = vmatpush1.bf16.msra.mxu0 0
    %1139 = vmatprep.subr.bf16.mxu0 0
    %1140 = vmatpush1.bf16.msra.mxu0 0
    %1141 = vmatprep.subr.bf16.mxu0 0
    %1142 = vmatpush1.bf16.msra.mxu0 0
    %1143 = vmatprep.subr.bf16.mxu0 0
    %1144 = vmatpush1.bf16.msra.mxu0 0
    %1145 = vmatprep.subr.bf16.mxu0 0
    %1146 = vmatpush1.bf16.msra.mxu0 0
    %1147 = vmatprep.subr.bf16.mxu0 0
    %1148 = vmatpush1.bf16.msra.mxu0 0
    %1149 = vmatprep.subr.bf16.mxu0 0
    %1150 = vmatpush1.bf16.msra.mxu0 0
    %1151 = vmatprep.mubr.bf16.mxu0 0
    %1152 = vmatmul.mubr.bf16.gmra.mrb[0].mxu0 %v1056
    %v1153 = vpop.f32.mrb[0].mxu0
    %v1154 = vadd.f32 0.0, %v1153
    %v1155 = vpop.f32.mrb[0].mxu0
    %v1156 = vadd.f32 0.0, %v1155
    %v1157 = vpop.f32.mrb[0].mxu0
    %v1158 = vpop.f32.mrb[0].mxu0
    %1159 = vdwg.mxu0
    %v1160 = vadd.f32 %v223, %v1154
    %v1161 = vadd.f32 %v225, %v1156
    %v1162 = vmul.f32 %v1160, 0.5
    %v1163 = vtanh.pop %v1162
    %v1164 = vadd.f32 %v1163, 1.0
    %v1165 = vmul.f32 %v1164, 0.5
    %v1166 = vtanh.pop %v1161
    %v1167 = vmul.f32 %v1161, 0.5
    %v1168 = vtanh.pop %v1167
    %v1169 = vadd.f32 %v1168, 1.0
    %v1170 = vmul.f32 %v1169, 0.5
    %v1172 = vrot.slane %v999, 6
    %v1174 = vmul.f32 %v1165, %v1172
    %v1175 = vmul.f32 %v1165, %v1166
    %1177 = vrot.lane.b32.xlu0 %v1175, 64
    %v1178 = vpop.permute.xlu0 %1177
    %v1180 = vadd.f32 %v1174, %v1178
    %v1181 = vtanh.pop %v1180
    %v1182 = vmul.f32 %v1170, %v1181
    %v1183 = vpack.c.bf16 %v1182, %v1182
    %v1184 = vpack.c.bf16 %v1118, %v1118
    %1186 = vrot.lane.b32.xlu0 %v1184, 64
    %v1187 = vpop.permute.xlu0 %1186
    %v1189 = vsel %vm293, %v1187, 0
    %1191 = vmatprep.subr.bf16.mxu0 %v384
    %1192 = vmatpush1.bf16.msra.mxu0 %v383
    %1193 = vmatprep.subr.bf16.mxu0 %v386
    %1194 = vmatpush1.bf16.msra.mxu0 %v385
    %1195 = vmatprep.subr.bf16.mxu0 %v388
    %1196 = vmatpush1.bf16.msra.mxu0 %v387
    %1197 = vmatprep.subr.bf16.mxu0 %v390
    %1198 = vmatpush1.bf16.msra.mxu0 %v389
    %1199 = vmatprep.subr.bf16.mxu0 0
    %1200 = vmatpush1.bf16.msra.mxu0 0
    %1201 = vmatprep.subr.bf16.mxu0 0
    %1202 = vmatpush1.bf16.msra.mxu0 0
    %1203 = vmatprep.subr.bf16.mxu0 0
    %1204 = vmatpush1.bf16.msra.mxu0 0
    %1205 = vmatprep.subr.bf16.mxu0 0
    %1206 = vmatpush1.bf16.msra.mxu0 0
    %1207 = vmatprep.subr.bf16.mxu0 0
    %1208 = vmatpush1.bf16.msra.mxu0 0
    %1209 = vmatprep.subr.bf16.mxu0 0
    %1210 = vmatpush1.bf16.msra.mxu0 0
    %1211 = vmatprep.subr.bf16.mxu0 0
    %1212 = vmatpush1.bf16.msra.mxu0 0
    %1213 = vmatprep.subr.bf16.mxu0 0
    %1214 = vmatpush1.bf16.msra.mxu0 0
    %1215 = vmatprep.subr.bf16.mxu0 0
    %1216 = vmatpush1.bf16.msra.mxu0 0
    %1217 = vmatprep.subr.bf16.mxu0 0
    %1218 = vmatpush1.bf16.msra.mxu0 0
    %1219 = vmatprep.subr.bf16.mxu0 0
    %1220 = vmatpush1.bf16.msra.mxu0 0
    %1221 = vmatprep.subr.bf16.mxu0 0
    %1222 = vmatpush1.bf16.msra.mxu0 0
    %1223 = vmatprep.mubr.bf16.mxu0 0
    %1224 = vmatmul.mubr.bf16.gmra.mrb[0].mxu0 %v1189
    %v1225 = vpop.f32.mrb[0].mxu0
    %v1226 = vadd.f32 0.0, %v1225
    %v1227 = vpop.f32.mrb[0].mxu0
    %v1228 = vadd.f32 0.0, %v1227
    %v1229 = vpop.f32.mrb[0].mxu0
    %v1230 = vpop.f32.mrb[0].mxu0
    %1231 = vdwg.mxu0
    %1233 = vrot.lane.b32.xlu0 %v1183, 64
    %v1234 = vpop.permute.xlu0 %1233
    %v1236 = vsel %vm293, %v1234, 0
    %1238 = vmatprep.subr.bf16.mxu0 %v468
    %1239 = vmatpush1.bf16.msra.mxu0 %v467
    %1240 = vmatprep.subr.bf16.mxu0 %v470
    %1241 = vmatpush1.bf16.msra.mxu0 %v469
    %1242 = vmatprep.subr.bf16.mxu0 %v472
    %1243 = vmatpush1.bf16.msra.mxu0 %v471
    %1244 = vmatprep.subr.bf16.mxu0 %v474
    %1245 = vmatpush1.bf16.msra.mxu0 %v473
    %1246 = vmatprep.subr.bf16.mxu0 0
    %1247 = vmatpush1.bf16.msra.mxu0 0
    %1248 = vmatprep.subr.bf16.mxu0 0
    %1249 = vmatpush1.bf16.msra.mxu0 0
    %1250 = vmatprep.subr.bf16.mxu0 0
    %1251 = vmatpush1.bf16.msra.mxu0 0
    %1252 = vmatprep.subr.bf16.mxu0 0
    %1253 = vmatpush1.bf16.msra.mxu0 0
    %1254 = vmatprep.subr.bf16.mxu0 0
    %1255 = vmatpush1.bf16.msra.mxu0 0
    %1256 = vmatprep.subr.bf16.mxu0 0
    %1257 = vmatpush1.bf16.msra.mxu0 0
    %1258 = vmatprep.subr.bf16.mxu0 0
    %1259 = vmatpush1.bf16.msra.mxu0 0
    %1260 = vmatprep.subr.bf16.mxu0 0
    %1261 = vmatpush1.bf16.msra.mxu0 0
    %1262 = vmatprep.subr.bf16.mxu0 0
    %1263 = vmatpush1.bf16.msra.mxu0 0
    %1264 = vmatprep.subr.bf16.mxu0 0
    %1265 = vmatpush1.bf16.msra.mxu0 0
    %1266 = vmatprep.subr.bf16.mxu0 0
    %1267 = vmatpush1.bf16.msra.mxu0 0
    %1268 = vmatprep.subr.bf16.mxu0 0
    %1269 = vmatpush1.bf16.msra.mxu0 0
    %1270 = vmatprep.mubr.bf16.mxu0 0
    %1271 = vmatmul.mubr.bf16.gmra.mrb[0].mxu0 %v1236
    %v1272 = vpop.f32.mrb[0].mxu0
    %v1273 = vadd.f32 %v1226, %v1272
    %v1274 = vpop.f32.mrb[0].mxu0
    %v1275 = vadd.f32 %v1228, %v1274
    %v1276 = vpop.f32.mrb[0].mxu0
    %v1277 = vpop.f32.mrb[0].mxu0
    %1278 = vdwg.mxu0
    %v1279 = vadd.f32 %v1273, %v531
    %v1280 = vadd.f32 %v1275, %v535
    %v1281 = vmul.f32 %v1279, 0.5
    %v1282 = vtanh.pop %v1281
    %v1283 = vadd.f32 %v1282, 1.0
    %v1284 = vmul.f32 %v1283, 0.5
    %v1285 = vtanh.pop %v1280
    %v1286 = vmul.f32 %v1280, 0.5
    %v1287 = vtanh.pop %v1286
    %v1288 = vadd.f32 %v1287, 1.0
    %v1289 = vmul.f32 %v1288, 0.5
    %v1290 = vmul.f32 %v1284, %v1116
    %v1291 = vmul.f32 %v1284, %v1285
    %1293 = vrot.lane.b32.xlu0 %v1291, 64
    %v1294 = vpop.permute.xlu0 %1293
    %v1296 = vadd.f32 %v1290, %v1294
    %v1297 = vtanh.pop %v1296
    %v1298 = vmul.f32 %v1289, %v1297
    %1299 = vmatprep.subr.bf16.mxu0 %v278
    %1300 = vmatpush1.bf16.msra.mxu0 %v277
    %1301 = vmatprep.subr.bf16.mxu0 %v280
    %1302 = vmatpush1.bf16.msra.mxu0 %v279
    %1303 = vmatprep.subr.bf16.mxu0 %v282
    %1304 = vmatpush1.bf16.msra.mxu0 %v281
    %1305 = vmatprep.subr.bf16.mxu0 %v284
    %1306 = vmatpush1.bf16.msra.mxu0 %v283
    %1307 = vmatprep.subr.bf16.mxu0 0
    %1308 = vmatpush1.bf16.msra.mxu0 0
    %1309 = vmatprep.subr.bf16.mxu0 0
    %1310 = vmatpush1.bf16.msra.mxu0 0
    %1311 = vmatprep.subr.bf16.mxu0 0
    %1312 = vmatpush1.bf16.msra.mxu0 0
    %1313 = vmatprep.subr.bf16.mxu0 0
    %1314 = vmatpush1.bf16.msra.mxu0 0
    %1315 = vmatprep.subr.bf16.mxu0 0
    %1316 = vmatpush1.bf16.msra.mxu0 0
    %1317 = vmatprep.subr.bf16.mxu0 0
    %1318 = vmatpush1.bf16.msra.mxu0 0
    %1319 = vmatprep.subr.bf16.mxu0 0
    %1320 = vmatpush1.bf16.msra.mxu0 0
    %1321 = vmatprep.subr.bf16.mxu0 0
    %1322 = vmatpush1.bf16.msra.mxu0 0
    %1323 = vmatprep.subr.bf16.mxu0 0
    %1324 = vmatpush1.bf16.msra.mxu0 0
    %1325 = vmatprep.subr.bf16.mxu0 0
    %1326 = vmatpush1.bf16.msra.mxu0 0
    %1327 = vmatprep.subr.bf16.mxu0 0
    %1328 = vmatpush1.bf16.msra.mxu0 0
    %1329 = vmatprep.subr.bf16.mxu0 0
    %1330 = vmatpush1.bf16.msra.mxu0 0
    %1331 = vmatprep.mubr.bf16.mxu0 0
    %1332 = vmatmul.mubr.bf16.gmra.mrb[0].mxu0 %v1236
    %v1333 = vpop.f32.mrb[0].mxu0
    %v1334 = vadd.f32 0.0, %v1333
    %v1335 = vpop.f32.mrb[0].mxu0
    %v1336 = vadd.f32 0.0, %v1335
    %v1337 = vpop.f32.mrb[0].mxu0
    %v1338 = vpop.f32.mrb[0].mxu0
    %1339 = vdwg.mxu0
    %v1342 = vrot.slane %v1334, 6
    %v1343 = vrot.slane %v1336, 6
    %v1346 = vadd.f32 %v223, %v1342
    %v1347 = vadd.f32 %v225, %v1343
    %v1348 = vmul.f32 %v1346, 0.5
    %v1349 = vtanh.pop %v1348
    %v1350 = vadd.f32 %v1349, 1.0
    %v1351 = vmul.f32 %v1350, 0.5
    %v1352 = vtanh.pop %v1347
    %v1353 = vmul.f32 %v1347, 0.5
    %v1354 = vtanh.pop %v1353
    %v1355 = vadd.f32 %v1354, 1.0
    %v1356 = vmul.f32 %v1355, 0.5
    %v1358 = vrot.slane %v1180, 6
    %v1360 = vmul.f32 %v1351, %v1358
    %v1361 = vmul.f32 %v1351, %v1352
    %1363 = vrot.lane.b32.xlu0 %v1361, 64
    %v1364 = vpop.permute.xlu0 %1363
    %v1366 = vadd.f32 %v1360, %v1364
    %v1367 = vtanh.pop %v1366
    %v1368 = vmul.f32 %v1356, %v1367
    %v1369 = vpack.c.bf16 %v1368, %v1368
    %v1370 = vpack.c.bf16 %v1298, %v1298
    %1372 = vrot.lane.b32.xlu0 %v1370, 64
    %v1373 = vpop.permute.xlu0 %1372
    %v1375 = vsel %vm293, %v1373, 0
    %1377 = vmatprep.subr.bf16.mxu0 %v384
    %1378 = vmatpush1.bf16.msra.mxu0 %v383
    %1379 = vmatprep.subr.bf16.mxu0 %v386
    %1380 = vmatpush1.bf16.msra.mxu0 %v385
    %1381 = vmatprep.subr.bf16.mxu0 %v388
    %1382 = vmatpush1.bf16.msra.mxu0 %v387
    %1383 = vmatprep.subr.bf16.mxu0 %v390
    %1384 = vmatpush1.bf16.msra.mxu0 %v389
    %1385 = vmatprep.subr.bf16.mxu0 0
    %1386 = vmatpush1.bf16.msra.mxu0 0
    %1387 = vmatprep.subr.bf16.mxu0 0
    %1388 = vmatpush1.bf16.msra.mxu0 0
    %1389 = vmatprep.subr.bf16.mxu0 0
    %1390 = vmatpush1.bf16.msra.mxu0 0
    %1391 = vmatprep.subr.bf16.mxu0 0
    %1392 = vmatpush1.bf16.msra.mxu0 0
    %1393 = vmatprep.subr.bf16.mxu0 0
    %1394 = vmatpush1.bf16.msra.mxu0 0
    %1395 = vmatprep.subr.bf16.mxu0 0
    %1396 = vmatpush1.bf16.msra.mxu0 0
    %1397 = vmatprep.subr.bf16.mxu0 0
    %1398 = vmatpush1.bf16.msra.mxu0 0
    %1399 = vmatprep.subr.bf16.mxu0 0
    %1400 = vmatpush1.bf16.msra.mxu0 0
    %1401 = vmatprep.subr.bf16.mxu0 0
    %1402 = vmatpush1.bf16.msra.mxu0 0
    %1403 = vmatprep.subr.bf16.mxu0 0
    %1404 = vmatpush1.bf16.msra.mxu0 0
    %1405 = vmatprep.subr.bf16.mxu0 0
    %1406 = vmatpush1.bf16.msra.mxu0 0
    %1407 = vmatprep.subr.bf16.mxu0 0
    %1408 = vmatpush1.bf16.msra.mxu0 0
    %1409 = vmatprep.mubr.bf16.mxu0 0
    %1410 = vmatmul.mubr.bf16.gmra.mrb[0].mxu0 %v1375
    %v1411 = vpop.f32.mrb[0].mxu0
    %v1412 = vadd.f32 0.0, %v1411
    %v1413 = vpop.f32.mrb[0].mxu0
    %v1414 = vadd.f32 0.0, %v1413
    %v1415 = vpop.f32.mrb[0].mxu0
    %v1416 = vpop.f32.mrb[0].mxu0
    %1417 = vdwg.mxu0
    %v1419 = vrot.slane %v1369, 1
    %1420 = vrot.lane.b32.xlu0 %v1419, 64
    %v1421 = vpop.permute.xlu0 %1420
    %v1423 = vsel %vm293, %v1421, 0
    %1425 = vmatprep.subr.bf16.mxu0 %v468
    %1426 = vmatpush1.bf16.msra.mxu0 %v467
    %1427 = vmatprep.subr.bf16.mxu0 %v470
    %1428 = vmatpush1.bf16.msra.mxu0 %v469
    %1429 = vmatprep.subr.bf16.mxu0 %v472
    %1430 = vmatpush1.bf16.msra.mxu0 %v471
    %1431 = vmatprep.subr.bf16.mxu0 %v474
    %1432 = vmatpush1.bf16.msra.mxu0 %v473
    %1433 = vmatprep.subr.bf16.mxu0 0
    %1434 = vmatpush1.bf16.msra.mxu0 0
    %1435 = vmatprep.subr.bf16.mxu0 0
    %1436 = vmatpush1.bf16.msra.mxu0 0
    %1437 = vmatprep.subr.bf16.mxu0 0
    %1438 = vmatpush1.bf16.msra.mxu0 0
    %1439 = vmatprep.subr.bf16.mxu0 0
    %1440 = vmatpush1.bf16.msra.mxu0 0
    %1441 = vmatprep.subr.bf16.mxu0 0
    %1442 = vmatpush1.bf16.msra.mxu0 0
    %1443 = vmatprep.subr.bf16.mxu0 0
    %1444 = vmatpush1.bf16.msra.mxu0 0
    %1445 = vmatprep.subr.bf16.mxu0 0
    %1446 = vmatpush1.bf16.msra.mxu0 0
    %1447 = vmatprep.subr.bf16.mxu0 0
    %1448 = vmatpush1.bf16.msra.mxu0 0
    %1449 = vmatprep.subr.bf16.mxu0 0
    %1450 = vmatpush1.bf16.msra.mxu0 0
    %1451 = vmatprep.subr.bf16.mxu0 0
    %1452 = vmatpush1.bf16.msra.mxu0 0
    %1453 = vmatprep.subr.bf16.mxu0 0
    %1454 = vmatpush1.bf16.msra.mxu0 0
    %1455 = vmatprep.subr.bf16.mxu0 0
    %1456 = vmatpush1.bf16.msra.mxu0 0
    %1457 = vmatprep.mubr.bf16.mxu0 0
    %1458 = vmatmul.mubr.bf16.gmra.mrb[0].mxu0 %v1423
    %v1459 = vpop.f32.mrb[0].mxu0
    %v1460 = vadd.f32 %v1412, %v1459
    %v1461 = vpop.f32.mrb[0].mxu0
    %v1462 = vadd.f32 %v1414, %v1461
    %v1463 = vpop.f32.mrb[0].mxu0
    %v1464 = vpop.f32.mrb[0].mxu0
    %1465 = vdwg.mxu0
    %v1466 = vadd.f32 %v1460, %v531
    %v1467 = vadd.f32 %v1462, %v535
    %v1468 = vmul.f32 %v1466, 0.5
    %v1469 = vtanh.pop %v1468
    %v1470 = vadd.f32 %v1469, 1.0
    %v1471 = vmul.f32 %v1470, 0.5
    %v1472 = vtanh.pop %v1467
    %v1473 = vmul.f32 %v1467, 0.5
    %v1474 = vtanh.pop %v1473
    %v1475 = vadd.f32 %v1474, 1.0
    %v1476 = vmul.f32 %v1475, 0.5
    %v1477 = vmul.f32 %v1471, %v1296
    %v1478 = vmul.f32 %v1471, %v1472
    %1480 = vrot.lane.b32.xlu0 %v1478, 64
    %v1481 = vpop.permute.xlu0 %1480
    %v1483 = vadd.f32 %v1477, %v1481
    %v1484 = vtanh.pop %v1483
    %v1485 = vmul.f32 %v1476, %v1484
    %1486 = vmatprep.subr.bf16.mxu0 %v278
    %1487 = vmatpush1.bf16.msra.mxu0 %v277
    %1488 = vmatprep.subr.bf16.mxu0 %v280
    %1489 = vmatpush1.bf16.msra.mxu0 %v279
    %1490 = vmatprep.subr.bf16.mxu0 %v282
    %1491 = vmatpush1.bf16.msra.mxu0 %v281
    %1492 = vmatprep.subr.bf16.mxu0 %v284
    %1493 = vmatpush1.bf16.msra.mxu0 %v283
    %1494 = vmatprep.subr.bf16.mxu0 0
    %1495 = vmatpush1.bf16.msra.mxu0 0
    %1496 = vmatprep.subr.bf16.mxu0 0
    %1497 = vmatpush1.bf16.msra.mxu0 0
    %1498 = vmatprep.subr.bf16.mxu0 0
    %1499 = vmatpush1.bf16.msra.mxu0 0
    %1500 = vmatprep.subr.bf16.mxu0 0
    %1501 = vmatpush1.bf16.msra.mxu0 0
    %1502 = vmatprep.subr.bf16.mxu0 0
    %1503 = vmatpush1.bf16.msra.mxu0 0
    %1504 = vmatprep.subr.bf16.mxu0 0
    %1505 = vmatpush1.bf16.msra.mxu0 0
    %1506 = vmatprep.subr.bf16.mxu0 0
    %1507 = vmatpush1.bf16.msra.mxu0 0
    %1508 = vmatprep.subr.bf16.mxu0 0
    %1509 = vmatpush1.bf16.msra.mxu0 0
    %1510 = vmatprep.subr.bf16.mxu0 0
    %1511 = vmatpush1.bf16.msra.mxu0 0
    %1512 = vmatprep.subr.bf16.mxu0 0
    %1513 = vmatpush1.bf16.msra.mxu0 0
    %1514 = vmatprep.subr.bf16.mxu0 0
    %1515 = vmatpush1.bf16.msra.mxu0 0
    %1516 = vmatprep.subr.bf16.mxu0 0
    %1517 = vmatpush1.bf16.msra.mxu0 0
    %1518 = vmatprep.mubr.bf16.mxu0 0
    %1519 = vmatmul.mubr.bf16.gmra.mrb[0].mxu0 %v1423
    %v1520 = vpop.f32.mrb[0].mxu0
    %v1521 = vadd.f32 0.0, %v1520
    %v1522 = vpop.f32.mrb[0].mxu0
    %v1523 = vadd.f32 0.0, %v1522
    %v1524 = vpop.f32.mrb[0].mxu0
    %v1525 = vpop.f32.mrb[0].mxu0
    %1526 = vdwg.mxu0
    %v1529 = vrot.slane %v1521, 4
    %v1530 = vrot.slane %v1523, 4
    %v1533 = vadd.f32 %v223, %v1529
    %v1534 = vadd.f32 %v225, %v1530
    %v1535 = vmul.f32 %v1533, 0.5
    %v1536 = vtanh.pop %v1535
    %v1537 = vadd.f32 %v1536, 1.0
    %v1538 = vmul.f32 %v1537, 0.5
    %v1539 = vtanh.pop %v1534
    %v1540 = vmul.f32 %v1534, 0.5
    %v1541 = vtanh.pop %v1540
    %v1542 = vadd.f32 %v1541, 1.0
    %v1543 = vmul.f32 %v1542, 0.5
    %v1545 = vrot.slane %v1366, 6
    %v1547 = vmul.f32 %v1538, %v1545
    %v1548 = vmul.f32 %v1538, %v1539
    %1550 = vrot.lane.b32.xlu0 %v1548, 64
    %v1551 = vpop.permute.xlu0 %1550
    %v1553 = vadd.f32 %v1547, %v1551
    %v1554 = vtanh.pop %v1553
    %v1555 = vmul.f32 %v1543, %v1554
    %v1556 = vpack.c.bf16 %v1555, %v1555
    %v1557 = vpack.c.bf16 %v1485, %v1485
    %1559 = vrot.lane.b32.xlu0 %v1557, 64
    %v1560 = vpop.permute.xlu0 %1559
    %v1562 = vsel %vm293, %v1560, 0
    %1564 = vmatprep.subr.bf16.mxu0 %v384
    %1565 = vmatpush1.bf16.msra.mxu0 %v383
    %1566 = vmatprep.subr.bf16.mxu0 %v386
    %1567 = vmatpush1.bf16.msra.mxu0 %v385
    %1568 = vmatprep.subr.bf16.mxu0 %v388
    %1569 = vmatpush1.bf16.msra.mxu0 %v387
    %1570 = vmatprep.subr.bf16.mxu0 %v390
    %1571 = vmatpush1.bf16.msra.mxu0 %v389
    %1572 = vmatprep.subr.bf16.mxu0 0
    %1573 = vmatpush1.bf16.msra.mxu0 0
    %1574 = vmatprep.subr.bf16.mxu0 0
    %1575 = vmatpush1.bf16.msra.mxu0 0
    %1576 = vmatprep.subr.bf16.mxu0 0
    %1577 = vmatpush1.bf16.msra.mxu0 0
    %1578 = vmatprep.subr.bf16.mxu0 0
    %1579 = vmatpush1.bf16.msra.mxu0 0
    %1580 = vmatprep.subr.bf16.mxu0 0
    %1581 = vmatpush1.bf16.msra.mxu0 0
    %1582 = vmatprep.subr.bf16.mxu0 0
    %1583 = vmatpush1.bf16.msra.mxu0 0
    %1584 = vmatprep.subr.bf16.mxu0 0
    %1585 = vmatpush1.bf16.msra.mxu0 0
    %1586 = vmatprep.subr.bf16.mxu0 0
    %1587 = vmatpush1.bf16.msra.mxu0 0
    %1588 = vmatprep.subr.bf16.mxu0 0
    %1589 = vmatpush1.bf16.msra.mxu0 0
    %1590 = vmatprep.subr.bf16.mxu0 0
    %1591 = vmatpush1.bf16.msra.mxu0 0
    %1592 = vmatprep.subr.bf16.mxu0 0
    %1593 = vmatpush1.bf16.msra.mxu0 0
    %1594 = vmatprep.subr.bf16.mxu0 0
    %1595 = vmatpush1.bf16.msra.mxu0 0
    %1596 = vmatprep.mubr.bf16.mxu0 0
    %1597 = vmatmul.mubr.bf16.gmra.mrb[0].mxu0 %v1562
    %v1598 = vpop.f32.mrb[0].mxu0
    %v1599 = vadd.f32 0.0, %v1598
    %v1600 = vpop.f32.mrb[0].mxu0
    %v1601 = vadd.f32 0.0, %v1600
    %v1602 = vpop.f32.mrb[0].mxu0
    %v1603 = vpop.f32.mrb[0].mxu0
    %1604 = vdwg.mxu0
    %v1606 = vrot.slane %v1556, 2
    %1607 = vrot.lane.b32.xlu0 %v1606, 64
    %v1608 = vpop.permute.xlu0 %1607
    %v1610 = vsel %vm293, %v1608, 0
    %1612 = vmatprep.subr.bf16.mxu0 %v468
    %1613 = vmatpush1.bf16.msra.mxu0 %v467
    %1614 = vmatprep.subr.bf16.mxu0 %v470
    %1615 = vmatpush1.bf16.msra.mxu0 %v469
    %1616 = vmatprep.subr.bf16.mxu0 %v472
    %1617 = vmatpush1.bf16.msra.mxu0 %v471
    %1618 = vmatprep.subr.bf16.mxu0 %v474
    %1619 = vmatpush1.bf16.msra.mxu0 %v473
    %1620 = vmatprep.subr.bf16.mxu0 0
    %1621 = vmatpush1.bf16.msra.mxu0 0
    %1622 = vmatprep.subr.bf16.mxu0 0
    %1623 = vmatpush1.bf16.msra.mxu0 0
    %1624 = vmatprep.subr.bf16.mxu0 0
    %1625 = vmatpush1.bf16.msra.mxu0 0
    %1626 = vmatprep.subr.bf16.mxu0 0
    %1627 = vmatpush1.bf16.msra.mxu0 0
    %1628 = vmatprep.subr.bf16.mxu0 0
    %1629 = vmatpush1.bf16.msra.mxu0 0
    %1630 = vmatprep.subr.bf16.mxu0 0
    %1631 = vmatpush1.bf16.msra.mxu0 0
    %1632 = vmatprep.subr.bf16.mxu0 0
    %1633 = vmatpush1.bf16.msra.mxu0 0
    %1634 = vmatprep.subr.bf16.mxu0 0
    %1635 = vmatpush1.bf16.msra.mxu0 0
    %1636 = vmatprep.subr.bf16.mxu0 0
    %1637 = vmatpush1.bf16.msra.mxu0 0
    %1638 = vmatprep.subr.bf16.mxu0 0
    %1639 = vmatpush1.bf16.msra.mxu0 0
    %1640 = vmatprep.subr.bf16.mxu0 0
    %1641 = vmatpush1.bf16.msra.mxu0 0
    %1642 = vmatprep.subr.bf16.mxu0 0
    %1643 = vmatpush1.bf16.msra.mxu0 0
    %1644 = vmatprep.mubr.bf16.mxu0 0
    %1645 = vmatmul.mubr.bf16.gmra.mrb[0].mxu0 %v1610
    %v1646 = vpop.f32.mrb[0].mxu0
    %v1647 = vadd.f32 %v1599, %v1646
    %v1648 = vpop.f32.mrb[0].mxu0
    %v1649 = vadd.f32 %v1601, %v1648
    %v1650 = vpop.f32.mrb[0].mxu0
    %v1651 = vpop.f32.mrb[0].mxu0
    %1652 = vdwg.mxu0
    %v1653 = vadd.f32 %v1647, %v531
    %v1654 = vadd.f32 %v1649, %v535
    %v1655 = vmul.f32 %v1653, 0.5
    %v1656 = vtanh.pop %v1655
    %v1657 = vadd.f32 %v1656, 1.0
    %v1658 = vmul.f32 %v1657, 0.5
    %v1659 = vtanh.pop %v1654
    %v1660 = vmul.f32 %v1654, 0.5
    %v1661 = vtanh.pop %v1660
    %v1662 = vadd.f32 %v1661, 1.0
    %v1663 = vmul.f32 %v1662, 0.5
    %v1664 = vmul.f32 %v1658, %v1483
    %v1665 = vmul.f32 %v1658, %v1659
    %1667 = vrot.lane.b32.xlu0 %v1665, 64
    %v1668 = vpop.permute.xlu0 %1667
    %v1670 = vadd.f32 %v1664, %v1668
    %v1671 = vtanh.pop %v1670
    %v1672 = vmul.f32 %v1663, %v1671
    %1673 = vmatprep.subr.bf16.mxu0 %v278
    %1674 = vmatpush1.bf16.msra.mxu0 %v277
    %1675 = vmatprep.subr.bf16.mxu0 %v280
    %1676 = vmatpush1.bf16.msra.mxu0 %v279
    %1677 = vmatprep.subr.bf16.mxu0 %v282
    %1678 = vmatpush1.bf16.msra.mxu0 %v281
    %1679 = vmatprep.subr.bf16.mxu0 %v284
    %1680 = vmatpush1.bf16.msra.mxu0 %v283
    %1681 = vmatprep.subr.bf16.mxu0 0
    %1682 = vmatpush1.bf16.msra.mxu0 0
    %1683 = vmatprep.subr.bf16.mxu0 0
    %1684 = vmatpush1.bf16.msra.mxu0 0
    %1685 = vmatprep.subr.bf16.mxu0 0
    %1686 = vmatpush1.bf16.msra.mxu0 0
    %1687 = vmatprep.subr.bf16.mxu0 0
    %1688 = vmatpush1.bf16.msra.mxu0 0
    %1689 = vmatprep.subr.bf16.mxu0 0
    %1690 = vmatpush1.bf16.msra.mxu0 0
    %1691 = vmatprep.subr.bf16.mxu0 0
    %1692 = vmatpush1.bf16.msra.mxu0 0
    %1693 = vmatprep.subr.bf16.mxu0 0
    %1694 = vmatpush1.bf16.msra.mxu0 0
    %1695 = vmatprep.subr.bf16.mxu0 0
    %1696 = vmatpush1.bf16.msra.mxu0 0
    %1697 = vmatprep.subr.bf16.mxu0 0
    %1698 = vmatpush1.bf16.msra.mxu0 0
    %1699 = vmatprep.subr.bf16.mxu0 0
    %1700 = vmatpush1.bf16.msra.mxu0 0
    %1701 = vmatprep.subr.bf16.mxu0 0
    %1702 = vmatpush1.bf16.msra.mxu0 0
    %1703 = vmatprep.subr.bf16.mxu0 0
    %1704 = vmatpush1.bf16.msra.mxu0 0
    %1705 = vmatprep.mubr.bf16.mxu0 0
    %1706 = vmatmul.mubr.bf16.gmra.mrb[0].mxu0 %v1610
    %v1707 = vpop.f32.mrb[0].mxu0
    %v1708 = vadd.f32 0.0, %v1707
    %v1709 = vpop.f32.mrb[0].mxu0
    %v1710 = vadd.f32 0.0, %v1709
    %v1711 = vpop.f32.mrb[0].mxu0
    %v1712 = vpop.f32.mrb[0].mxu0
    %1713 = vdwg.mxu0
    %v1716 = vrot.slane %v1708, 2
    %v1717 = vrot.slane %v1710, 2
    %v1720 = vadd.f32 %v223, %v1716
    %v1721 = vadd.f32 %v225, %v1717
    %v1722 = vmul.f32 %v1720, 0.5
    %v1723 = vtanh.pop %v1722
    %v1724 = vadd.f32 %v1723, 1.0
    %v1725 = vmul.f32 %v1724, 0.5
    %v1726 = vtanh.pop %v1721
    %v1727 = vmul.f32 %v1721, 0.5
    %v1728 = vtanh.pop %v1727
    %v1729 = vadd.f32 %v1728, 1.0
    %v1730 = vmul.f32 %v1729, 0.5
    %v1732 = vrot.slane %v1553, 6
    %v1734 = vmul.f32 %v1725, %v1732
    %v1735 = vmul.f32 %v1725, %v1726
    %1737 = vrot.lane.b32.xlu0 %v1735, 64
    %v1738 = vpop.permute.xlu0 %1737
    %v1740 = vadd.f32 %v1734, %v1738
    %v1741 = vtanh.pop %v1740
    %v1742 = vmul.f32 %v1730, %v1741
    %v1743 = vpack.c.bf16 %v1742, %v1742
    %v1744 = vpack.c.bf16 %v1672, %v1672
    %1746 = vrot.lane.b32.xlu0 %v1744, 64
    %v1747 = vpop.permute.xlu0 %1746
    %v1749 = vsel %vm293, %v1747, 0
    %1751 = vmatprep.subr.bf16.mxu0 %v384
    %1752 = vmatpush1.bf16.msra.mxu0 %v383
    %1753 = vmatprep.subr.bf16.mxu0 %v386
    %1754 = vmatpush1.bf16.msra.mxu0 %v385
    %1755 = vmatprep.subr.bf16.mxu0 %v388
    %1756 = vmatpush1.bf16.msra.mxu0 %v387
    %1757 = vmatprep.subr.bf16.mxu0 %v390
    %1758 = vmatpush1.bf16.msra.mxu0 %v389
    %1759 = vmatprep.subr.bf16.mxu0 0
    %1760 = vmatpush1.bf16.msra.mxu0 0
    %1761 = vmatprep.subr.bf16.mxu0 0
    %1762 = vmatpush1.bf16.msra.mxu0 0
    %1763 = vmatprep.subr.bf16.mxu0 0
    %1764 = vmatpush1.bf16.msra.mxu0 0
    %1765 = vmatprep.subr.bf16.mxu0 0
    %1766 = vmatpush1.bf16.msra.mxu0 0
    %1767 = vmatprep.subr.bf16.mxu0 0
    %1768 = vmatpush1.bf16.msra.mxu0 0
    %1769 = vmatprep.subr.bf16.mxu0 0
    %1770 = vmatpush1.bf16.msra.mxu0 0
    %1771 = vmatprep.subr.bf16.mxu0 0
    %1772 = vmatpush1.bf16.msra.mxu0 0
    %1773 = vmatprep.subr.bf16.mxu0 0
    %1774 = vmatpush1.bf16.msra.mxu0 0
    %1775 = vmatprep.subr.bf16.mxu0 0
    %1776 = vmatpush1.bf16.msra.mxu0 0
    %1777 = vmatprep.subr.bf16.mxu0 0
    %1778 = vmatpush1.bf16.msra.mxu0 0
    %1779 = vmatprep.subr.bf16.mxu0 0
    %1780 = vmatpush1.bf16.msra.mxu0 0
    %1781 = vmatprep.subr.bf16.mxu0 0
    %1782 = vmatpush1.bf16.msra.mxu0 0
    %1783 = vmatprep.mubr.bf16.mxu0 0
    %1784 = vmatmul.mubr.bf16.gmra.mrb[0].mxu0 %v1749
    %v1785 = vpop.f32.mrb[0].mxu0
    %v1786 = vadd.f32 0.0, %v1785
    %v1787 = vpop.f32.mrb[0].mxu0
    %v1788 = vadd.f32 0.0, %v1787
    %v1789 = vpop.f32.mrb[0].mxu0
    %v1790 = vpop.f32.mrb[0].mxu0
    %1791 = vdwg.mxu0
    %v1793 = vrot.slane %v1743, 3
    %1794 = vrot.lane.b32.xlu0 %v1793, 64
    %v1795 = vpop.permute.xlu0 %1794
    %v1797 = vsel %vm293, %v1795, 0
    %1799 = vmatprep.subr.bf16.mxu0 %v468
    %1800 = vmatpush1.bf16.msra.mxu0 %v467
    %1801 = vmatprep.subr.bf16.mxu0 %v470
    %1802 = vmatpush1.bf16.msra.mxu0 %v469
    %1803 = vmatprep.subr.bf16.mxu0 %v472
    %1804 = vmatpush1.bf16.msra.mxu0 %v471
    %1805 = vmatprep.subr.bf16.mxu0 %v474
    %1806 = vmatpush1.bf16.msra.mxu0 %v473
    %1807 = vmatprep.subr.bf16.mxu0 0
    %1808 = vmatpush1.bf16.msra.mxu0 0
    %1809 = vmatprep.subr.bf16.mxu0 0
    %1810 = vmatpush1.bf16.msra.mxu0 0
    %1811 = vmatprep.subr.bf16.mxu0 0
    %1812 = vmatpush1.bf16.msra.mxu0 0
    %1813 = vmatprep.subr.bf16.mxu0 0
    %1814 = vmatpush1.bf16.msra.mxu0 0
    %1815 = vmatprep.subr.bf16.mxu0 0
    %1816 = vmatpush1.bf16.msra.mxu0 0
    %1817 = vmatprep.subr.bf16.mxu0 0
    %1818 = vmatpush1.bf16.msra.mxu0 0
    %1819 = vmatprep.subr.bf16.mxu0 0
    %1820 = vmatpush1.bf16.msra.mxu0 0
    %1821 = vmatprep.subr.bf16.mxu0 0
    %1822 = vmatpush1.bf16.msra.mxu0 0
    %1823 = vmatprep.subr.bf16.mxu0 0
    %1824 = vmatpush1.bf16.msra.mxu0 0
    %1825 = vmatprep.subr.bf16.mxu0 0
    %1826 = vmatpush1.bf16.msra.mxu0 0
    %1827 = vmatprep.subr.bf16.mxu0 0
    %1828 = vmatpush1.bf16.msra.mxu0 0
    %1829 = vmatprep.subr.bf16.mxu0 0
    %1830 = vmatpush1.bf16.msra.mxu0 0
    %1831 = vmatprep.mubr.bf16.mxu0 0
    %1832 = vmatmul.mubr.bf16.gmra.mrb[0].mxu0 %v1797
    %v1833 = vpop.f32.mrb[0].mxu0
    %v1834 = vadd.f32 %v1786, %v1833
    %v1835 = vpop.f32.mrb[0].mxu0
    %v1836 = vadd.f32 %v1788, %v1835
    %v1837 = vpop.f32.mrb[0].mxu0
    %v1838 = vpop.f32.mrb[0].mxu0
    %1839 = vdwg.mxu0
    %v1840 = vadd.f32 %v1834, %v531
    %v1841 = vadd.f32 %v1836, %v535
    %v1842 = vmul.f32 %v1840, 0.5
    %v1843 = vtanh.pop %v1842
    %v1844 = vadd.f32 %v1843, 1.0
    %v1845 = vmul.f32 %v1844, 0.5
    %v1846 = vtanh.pop %v1841
    %v1847 = vmul.f32 %v1841, 0.5
    %v1848 = vtanh.pop %v1847
    %v1849 = vadd.f32 %v1848, 1.0
    %v1850 = vmul.f32 %v1849, 0.5
    %v1851 = vmul.f32 %v1845, %v1670
    %v1852 = vmul.f32 %v1845, %v1846
    %1854 = vrot.lane.b32.xlu0 %v1852, 64
    %v1855 = vpop.permute.xlu0 %1854
    %v1857 = vadd.f32 %v1851, %v1855
    %v1858 = vtanh.pop %v1857
    %v1859 = vmul.f32 %v1850, %v1858
    %v1861 = vlaneseq
    %v1862 = vshrl.u32 %v1861, 7
    %v1863 = vsub.s32 0, %v1862
    %v1864 = vrot.slane %v252, %v1863
    %1865 = vrot.lane.b32.xlu0 %v1864, 64
    %v1866 = vpop.permute.xlu0 %1865
    %v1868 = vmul.f32 %v1859, %v1866
    %1870 = vrot.lane.b32.xlu0 %v1868, 64
    %v1871 = vpop.permute.xlu0 %1870
    %vm1873 = vcmask 517120
    %v1874 = vsel %vm1873, %v1871, 0.0
    %1875 = vadd.xlane.f32.xlu0 %v1874
    %v1876 = vpop.xlane.xlu0 %1875
    %v1877 = vld [vmem:[#allocation2] sm:$0x1]
    %v1879 = vlaneseq
    %v1880 = vshrl.u32 %v1879, 7
    %v1881 = vsub.s32 0, %v1880
    %v1882 = vrot.slane %v1877, %v1881
    %v1884 = vadd.f32 %v1876, %v1882
    %v1885 = vmul.f32 %v1884, 0.5
    %v1886 = vtanh.pop %v1885
    %v1887 = vadd.f32 %v1886, 1.0
    %v1888 = vmul.f32 %v1887, 0.5
    %1890 = vset.pattern.permute.xlu0 0
    %1891 = vperm.xlu0 %1890, %v1888
    %v1892 = vpop.permute.xlu0 %1891
    %1894 = vst [vmem:[#allocation12] sm:$0x3] %v1892
    // Predicated region
    $region58: #{tpu_custom_call.1} parent=1 // pred_check
      _
    $region59: #{tpu_custom_call.1} parent=1 // pred_check_branch
      %1896 = sbr.rel (0) target = $region61
    $region60: #{tpu_custom_call.1} parent=1 // pred_region
      %s1898 = ssub.s32 32, 32
      %1899 = vsyncadd [#allocation5], %s1898
      %s1901 = sshll.u32 [#allocation12], 4
      %s1902 = int_to_ptr.vmem [resolvable:$true] %s1901
      %1904 = dma.vmem_to_hbm [thread:$0]  %s1902, 32, %s9, [#allocation5]
    $region61: #{tpu_custom_call.1} parent=1 // pred_fallthru
      _
    // Predicated region
    $region62: #{tpu_custom_call.1} parent=1 // pred_check
      _
    $region63: #{tpu_custom_call.1} parent=1 // pred_check_branch
      %1906 = sbr.rel (0) target = $region65
    $region64: #{tpu_custom_call.1} parent=1 // pred_region
      %1907 = dma.done [#allocation5], 32
    $region65: #{tpu_custom_call.1} parent=1 // pred_fallthru
      _
    %1908 = vsyncpa [#allocation4], 1
    %1909 = vsyncpa [#allocation7], 1
    %1910 = vsyncpa [#allocation10], 1
    %1911 = vsyncpa [#allocation5], 1

</llo_original>
